<compile_context>
chip_gen: v5e
topology: v5e:2x2
jax: 0.10.0
libtpu: 0.0.40
codegen_flags: <defaults>
</compile_context>

<pallas_src>
import functools

import jax
import jax.numpy as jnp
import numpy as np
from jax.experimental import pallas as pl
from jax.experimental.pallas import tpu as pltpu


# ---------------------------------------------------------------------------
# Kernel body (shared by masked / no-mask variants).
# One grid step = wb windows (T = wb*N tokens), all heads fused.
# ---------------------------------------------------------------------------
def _attn_body(x_ref, wqkv_ref, bqkv_ref, bias_ref, mask_ref, wproj_ref,
               bproj_ref, o_ref, attn_out_ref, *, wb, n, nh, hd, compute_dtype):
    T = wb * n
    C = nh * hd

    x = x_ref[0].astype(compute_dtype)                        # (T, C), cast once

    # Fused QKV projection: the MXU-shaped matmul (M=T, K=C, N=3C), f32 acc.
    qkv = (jnp.dot(x, wqkv_ref[...], preferred_element_type=jnp.float32)
           + bqkv_ref[...])                                   # (T, 3C) f32

    bias = bias_ref[...]                                      # (nh, n, n) f32
    mask = None if mask_ref is None else mask_ref[...]        # (wb, n, n) f32

    # Per-head attention, batched over the wb windows.  nh is small & static.
    for h in range(nh):
        qh = qkv[:, h * hd:(h + 1) * hd].astype(compute_dtype).reshape(wb, n, hd)
        kh = qkv[:, C + h * hd:C + (h + 1) * hd].astype(compute_dtype).reshape(wb, n, hd)
        vh = qkv[:, 2 * C + h * hd:2 * C + (h + 1) * hd].astype(compute_dtype).reshape(wb, n, hd)

        s = jnp.einsum("wnd,wmd->wnm", qh, kh,
                       preferred_element_type=jnp.float32)    # (wb, n, n) f32
        s = s + bias[h][None, :, :]
        if mask is not None:
            s = s + mask

        # Numerically-stable softmax in f32; denom via EUP approx reciprocal
        # (deliberate ~1e-4-level deviation from exact softmax).
        s = s - jnp.max(s, axis=-1, keepdims=True)
        p = jnp.exp(s)
        p = p * pl.reciprocal(jnp.sum(p, axis=-1, keepdims=True), approx=True)

        oh = jnp.einsum("wnm,wmd->wnd", p.astype(compute_dtype), vh,
                        preferred_element_type=jnp.float32)   # (wb, n, hd) f32

        # Write this head's output into its column slab of the (T, C) scratch.
        attn_out_ref[:, h * hd:(h + 1) * hd] = (
            oh.reshape(T, hd).astype(compute_dtype))

    # Single fused output projection over all heads (K=C), bias added in f32.
    out = (jnp.dot(attn_out_ref[...], wproj_ref[...],
                   preferred_element_type=jnp.float32) + bproj_ref[...])
    o_ref[0] = out.astype(o_ref.dtype)


def _window_attn_kernel_masked(x_ref, wqkv_ref, bqkv_ref, bias_ref, mask_ref,
                               wproj_ref, bproj_ref, o_ref, attn_out_ref, *,
                               wb, n, nh, hd, compute_dtype):
    _attn_body(x_ref, wqkv_ref, bqkv_ref, bias_ref, mask_ref, wproj_ref,
               bproj_ref, o_ref, attn_out_ref,
               wb=wb, n=n, nh=nh, hd=hd, compute_dtype=compute_dtype)


def _window_attn_kernel_nomask(x_ref, wqkv_ref, bqkv_ref, bias_ref,
                               wproj_ref, bproj_ref, o_ref, attn_out_ref, *,
                               wb, n, nh, hd, compute_dtype):
    _attn_body(x_ref, wqkv_ref, bqkv_ref, bias_ref, None, wproj_ref,
               bproj_ref, o_ref, attn_out_ref,
               wb=wb, n=n, nh=nh, hd=hd, compute_dtype=compute_dtype)


# ---------------------------------------------------------------------------
# One-time parameter preparation (hoisted out of the forward call).
# ---------------------------------------------------------------------------
def _relative_position_index(window_size):
    Wh, Ww = window_size
    coords = np.stack(np.meshgrid(np.arange(Wh), np.arange(Ww), indexing="ij"))
    coords_flatten = coords.reshape(2, -1)                             # (2, N)
    rel = coords_flatten[:, :, None] - coords_flatten[:, None, :]      # (2, N, N)
    rel = rel.transpose(1, 2, 0).astype(np.int64)                      # (N, N, 2)
    rel[:, :, 0] += Wh - 1
    rel[:, :, 1] += Ww - 1
    rel[:, :, 0] *= 2 * Ww - 1
    return jnp.asarray(rel.sum(-1), dtype=jnp.int32)                   # (N, N)


def prepare_params(params, window_size, num_heads, qk_scale=None,
                   compute_dtype=jnp.bfloat16):
    """Kernel-ready parameters: fused QKV weight (scale folded, bf16),
    transposed projection weight (bf16), pre-gathered rel-pos bias (f32)."""
    Wh, Ww = window_size
    N = Wh * Ww
    C = params["qkv_w"].shape[1]
    assert C % num_heads == 0
    hd = C // num_heads
    scale = qk_scale if qk_scale is not None else hd ** (-0.5)

    qkv_w = jnp.asarray(params["qkv_w"], jnp.float32)     # (3C, C) rows=out ch
    qkv_b = jnp.asarray(params["qkv_b"], jnp.float32)     # (3C,)
    proj_w = jnp.asarray(params["proj_w"], jnp.float32)   # (C, C)
    proj_b = jnp.asarray(params["proj_b"], jnp.float32)   # (C,)

    # Fold the softmax scale into the Q third of the fused QKV projection.
    scale_vec = jnp.concatenate([jnp.full((C,), scale, jnp.float32),
                                 jnp.ones((2 * C,), jnp.float32)])
    qkv_w = qkv_w * scale_vec[:, None]
    qkv_b = qkv_b * scale_vec

    wqkv = qkv_w.T.astype(compute_dtype)                  # (C, 3C) bf16
    bqkv = qkv_b.reshape(1, 3 * C)                        # (1, 3C) f32
    wproj = proj_w.T.astype(compute_dtype)                # (C, C) bf16
    bproj = proj_b.reshape(1, C)                          # (1, C) f32

    rel_index = _relative_position_index(window_size)     # (N, N)
    bias = jnp.asarray(params["rel_pos_table"], jnp.float32)[rel_index.reshape(-1)]
    bias = bias.reshape(N, N, num_heads).transpose(2, 0, 1)   # (nH, N, N) f32

    return dict(wqkv=wqkv, bqkv=bqkv, wproj=wproj, bproj=bproj, bias=bias,
                num_heads=num_heads, head_dim=hd, N=N, C=C,
                compute_dtype=compute_dtype)


# ---------------------------------------------------------------------------
# Wrapper: block/grid selection and pallas_call plumbing.
# ---------------------------------------------------------------------------
def _vmem_limit_bytes(T, C, N, nh, wb, x_itemsize, out_itemsize, w_itemsize,
                      has_mask):
    est = 0
    est += 2 * T * C * x_itemsize              # double-buffered x block
    est += 2 * T * C * out_itemsize            # double-buffered out block
    est += T * C * w_itemsize                  # attn-output scratch
    est += (3 * C * C + C * C) * w_itemsize    # resident wqkv + wproj
    est += (3 * C + C) * 4                     # bqkv + bproj (f32)
    est += nh * N * N * 4                      # resident rel-pos bias
    if has_mask:
        est += 2 * wb * N * N * 4              # mask block (double-buffered)
    est += T * 3 * C * 4                       # fused qkv intermediate (f32)
    est += 3 * T * C * 4                       # q/k/v slices + relayout slack
    est += 6 * wb * N * N * 4                  # scores / probs / temps
    # 2x headroom; clamp so we stay well within v7x's 64 MiB physical VMEM.
    return int(min(max(2 * est, 16 * 1024 * 1024), 48 * 1024 * 1024))


def window_attention(x, prep, mask=None, *, max_block_tokens=512,
                     attn_drop=0.0, proj_drop=0.0):
    """x: (num_windows*B, N, C); mask: (nW, N, N) additive (0/-100) or None."""
    assert attn_drop == 0.0 and proj_drop == 0.0, \
        "Dropout is omitted; only the default p=0.0 configuration is supported."

    B_, N, C = x.shape
    nh = prep["num_heads"]
    hd = prep["head_dim"]
    compute_dtype = prep["compute_dtype"]
    assert N == prep["N"] and C == prep["C"]

    if N > max_block_tokens:
        raise ValueError(
            f"window tokens N={N} exceed max_block_tokens={max_block_tokens}; "
            "raise max_block_tokens (and vmem budget) explicitly.")

    nW = None if mask is None else mask.shape[0]
    if nW is not None:
        assert B_ % nW == 0

    # Windows per grid step: largest divisor of B_ such that
    #   * wb*N <= max_block_tokens (VMEM budget),
    #   * G = B_/wb >= 2 when possible (megacore on v7x),
    #   * wb divides nW or is a multiple of nW (mask indexing stays simple).
    wb_cap = B_ // 2 if B_ >= 2 else B_
    wb = 1
    for d in range(1, B_ + 1):
        if B_ % d != 0 or d > wb_cap or d * N > max_block_tokens:
            continue
        if nW is not None and not (nW % d == 0 or d % nW == 0):
            continue
        wb = d
    G = B_ // wb
    T = wb * N

    x2 = x.reshape(G, T, C)

    in_specs = [
        pl.BlockSpec((1, T, C), lambda g: (g, 0, 0)),          # x slab
        pl.BlockSpec((C, 3 * C), lambda g: (0, 0)),            # fused Wqkv (resident)
        pl.BlockSpec((1, 3 * C), lambda g: (0, 0)),            # bqkv (resident)
        pl.BlockSpec((nh, N, N), lambda g: (0, 0, 0)),         # rel-pos bias (resident)
    ]
    args = [x2, prep["wqkv"], prep["bqkv"], prep["bias"]]

    if mask is not None:
        mask_f32 = mask.astype(jnp.float32)
        if wb <= nW:
            reps = nW // wb
            mask_arr = mask_f32                                # native (nW, N, N)
            mask_spec = pl.BlockSpec((wb, N, N), lambda g: (g % reps, 0, 0))
        else:
            # wb is a multiple of nW: tile once to exactly one block -> resident.
            mask_arr = jnp.tile(mask_f32, (wb // nW, 1, 1))    # (wb, N, N)
            mask_spec = pl.BlockSpec((wb, N, N), lambda g: (0, 0, 0))
        in_specs.append(mask_spec)
        args.append(mask_arr)
        kernel_fn = _window_attn_kernel_masked
    else:
        kernel_fn = _window_attn_kernel_nomask

    in_specs += [
        pl.BlockSpec((C, C), lambda g: (0, 0)),                # Wproj (resident)
        pl.BlockSpec((1, C), lambda g: (0, 0)),                # bproj (resident)
    ]
    args += [prep["wproj"], prep["bproj"]]

    kernel = functools.partial(kernel_fn, wb=wb, n=N, nh=nh, hd=hd,
                               compute_dtype=compute_dtype)

    vmem_limit = _vmem_limit_bytes(
        T, C, N, nh, wb,
        x_itemsize=x.dtype.itemsize,
        out_itemsize=x.dtype.itemsize,
        w_itemsize=jnp.dtype(compute_dtype).itemsize,
        has_mask=mask is not None)

    out = pl.pallas_call(
        kernel,
        out_shape=jax.ShapeDtypeStruct((G, T, C), x.dtype),
        grid_spec=pltpu.PrefetchScalarGridSpec(
            num_scalar_prefetch=0,
            grid=(G,),
            in_specs=in_specs,
            out_specs=pl.BlockSpec((1, T, C), lambda g: (g, 0, 0)),
            scratch_shapes=[pltpu.VMEM((T, C), compute_dtype)],
        ),
        compiler_params=pltpu.CompilerParams(
            dimension_semantics=("parallel",),   # window-block axis -> 2 TCs on v7x
            vmem_limit_bytes=vmem_limit),
    )(*args)

    return out.reshape(B_, N, C)


# ---------------------------------------------------------------------------
# Pure-JAX reference (mirrors the PyTorch forward) for correctness check
# ---------------------------------------------------------------------------
def window_attention_ref(x, params, window_size, num_heads, mask=None,
                         qk_scale=None):
    B_, N, C = x.shape
    head_dim = C // num_heads
    scale = qk_scale if qk_scale is not None else head_dim ** (-0.5)

    qkv = x @ params["qkv_w"].T + params["qkv_b"]                      # (B_, N, 3C)
    qkv = qkv.reshape(B_, N, 3, num_heads, head_dim).transpose(2, 0, 3, 1, 4)
    q, k, v = qkv[0], qkv[1], qkv[2]                                   # (B_, nH, N, hd)
    q = q * scale
    attn = jnp.einsum("bhnd,bhmd->bhnm", q, k)

    rel_index = _relative_position_index(window_size)
    bias = params["rel_pos_table"][rel_index.reshape(-1)]
    bias = bias.reshape(N, N, num_heads).transpose(2, 0, 1)            # (nH, N, N)
    attn = attn + bias[None]

    if mask is not None:
        nW = mask.shape[0]
        attn = attn.reshape(B_ // nW, nW, num_heads, N, N) + mask[None, :, None]
        attn = attn.reshape(-1, num_heads, N, N)
    attn = jax.nn.softmax(attn, axis=-1)

    out = jnp.einsum("bhnm,bhmd->bhnd", attn, v).transpose(0, 2, 1, 3).reshape(B_, N, C)
    out = out @ params["proj_w"].T + params["proj_b"]
    return out


# ---------------------------------------------------------------------------
# Main
# ---------------------------------------------------------------------------
if __name__ == "__main__":
    key = jax.random.PRNGKey(0)
    k1, k2, k3, k4, k5, k6, k7 = jax.random.split(key, 7)

    # small, module-consistent shapes
    dim = 32
    window_size = (4, 4)
    num_heads = 4
    N = window_size[0] * window_size[1]        # 16 tokens per window
    batch = 2
    nW = 4                                     # windows per image
    B_ = batch * nW                            # 8 window-batches

    params = {
        "rel_pos_table": 0.02 * jax.random.normal(
            k1, ((2 * window_size[0] - 1) * (2 * window_size[1] - 1), num_heads),
            dtype=jnp.float32),
        "qkv_w": 0.05 * jax.random.normal(k2, (3 * dim, dim), dtype=jnp.float32),
        "qkv_b": 0.05 * jax.random.normal(k3, (3 * dim,), dtype=jnp.float32),
        "proj_w": 0.05 * jax.random.normal(k4, (dim, dim), dtype=jnp.float32),
        "proj_b": 0.05 * jax.random.normal(k5, (dim,), dtype=jnp.float32),
    }

    # input features: (num_windows*B, N, C)
    x = jax.random.normal(k6, (B_, N, dim), dtype=jnp.float32)

    # (0 / -100) shifted-window style mask: (nW, N, N)
    mask_pattern = jax.random.bernoulli(k7, 0.8, (nW, N, N))
    mask = jnp.where(mask_pattern, 0.0, -100.0).astype(jnp.float32)

    # one-time parameter prep (hoisted out of the forward path)
    prep = prepare_params(params, window_size, num_heads)

    out = jax.block_until_ready(window_attention(x, prep, mask=mask))
    ref = window_attention_ref(x, params, window_size, num_heads, mask=mask)
    # bf16 MXU operands + approx softmax reciprocal -> slightly relaxed tolerance
    np.testing.assert_allclose(np.asarray(out), np.asarray(ref),
                               rtol=2e-2, atol=2e-2)

    # also exercise the (separately-compiled) mask=None variant
    out_nomask = jax.block_until_ready(window_attention(x, prep, mask=None))
    ref_nomask = window_attention_ref(x, params, window_size, num_heads, mask=None)
    np.testing.assert_allclose(np.asarray(out_nomask), np.asarray(ref_nomask),
                               rtol=2e-2, atol=2e-2)

    print("KERNEL_OK")
</pallas_src>

<mosaic_0001>
module attributes {stable_mosaic.version = 11 : i64} {
  func.func @_window_attn_kernel_masked(%arg0: i32, %arg1: memref<1x64x32xf32, #tpu.memory_space<vmem>>, %arg2: memref<32x96xbf16, #tpu.memory_space<vmem>>, %arg3: memref<1x96xf32, #tpu.memory_space<vmem>>, %arg4: memref<4x16x16xf32, #tpu.memory_space<vmem>>, %arg5: memref<4x16x16xf32, #tpu.memory_space<vmem>>, %arg6: memref<32x32xbf16, #tpu.memory_space<vmem>>, %arg7: memref<1x32xf32, #tpu.memory_space<vmem>>, %arg8: memref<1x64x32xf32, #tpu.memory_space<vmem>>, %arg9: memref<64x32xbf16, #tpu.memory_space<vmem>>) attributes {dimension_semantics = [#tpu.dimension_semantics<parallel>], iteration_bounds = array<i64: 2>, scalar_prefetch = 0 : i64, scratch_operands = 1 : i64, tpu.core_type = #tpu.core_type<tc>, window_params = [{transform_indices = @transform_0, window_bounds = array<i64: 1, 64, 32>}, {pipeline_mode = #tpu.pipeline_mode<synchronous>, transform_indices = @transform_1, window_bounds = array<i64: 32, 96>}, {pipeline_mode = #tpu.pipeline_mode<synchronous>, transform_indices = @transform_2, window_bounds = array<i64: 1, 96>}, {pipeline_mode = #tpu.pipeline_mode<synchronous>, transform_indices = @transform_3, window_bounds = array<i64: 4, 16, 16>}, {transform_indices = @transform_4, window_bounds = array<i64: 4, 16, 16>}, {pipeline_mode = #tpu.pipeline_mode<synchronous>, transform_indices = @transform_5, window_bounds = array<i64: 32, 32>}, {pipeline_mode = #tpu.pipeline_mode<synchronous>, transform_indices = @transform_6, window_bounds = array<i64: 1, 32>}, {transform_indices = @transform_7, window_bounds = array<i64: 1, 64, 32>}]} {
    %c0 = arith.constant 0 : index
    %c0_0 = arith.constant 0 : index
    %c0_1 = arith.constant 0 : index
    %0 = vector.load %arg1[%c0, %c0_0, %c0_1] : memref<1x64x32xf32, #tpu.memory_space<vmem>>, vector<1x64x32xf32>
    %1 = vector.shape_cast %0 : vector<1x64x32xf32> to vector<64x32xf32>
    %2 = arith.truncf %1 : vector<64x32xf32> to vector<64x32xbf16>
    %c0_2 = arith.constant 0 : index
    %c0_3 = arith.constant 0 : index
    %3 = vector.load %arg2[%c0_2, %c0_3] : memref<32x96xbf16, #tpu.memory_space<vmem>>, vector<32x96xbf16>
    %cst = arith.constant dense<0.000000e+00> : vector<64x96xf32>
    %4 = tpu.matmul %2, %3, %cst {dimension_numbers = #tpu.dot_dimension_numbers<[1], [0], [0], [1], [0, 0, 1, 1], [], []>} : vector<64x32xbf16>, vector<32x96xbf16>, vector<64x96xf32> -> vector<64x96xf32>
    %c0_4 = arith.constant 0 : index
    %c0_5 = arith.constant 0 : index
    %5 = vector.load %arg3[%c0_4, %c0_5] : memref<1x96xf32, #tpu.memory_space<vmem>>, vector<1x96xf32>
    %6 = vector.broadcast %5 : vector<1x96xf32> to vector<64x96xf32>
    %7 = arith.addf %4, %6 : vector<64x96xf32>
    %c0_6 = arith.constant 0 : index
    %c0_7 = arith.constant 0 : index
    %c0_8 = arith.constant 0 : index
    %8 = vector.load %arg4[%c0_6, %c0_7, %c0_8] : memref<4x16x16xf32, #tpu.memory_space<vmem>>, vector<4x16x16xf32>
    %c0_9 = arith.constant 0 : index
    %c0_10 = arith.constant 0 : index
    %c0_11 = arith.constant 0 : index
    %9 = vector.load %arg5[%c0_9, %c0_10, %c0_11] : memref<4x16x16xf32, #tpu.memory_space<vmem>>, vector<4x16x16xf32>
    %10 = vector.extract_strided_slice %7 {offsets = [0, 0], sizes = [64, 8], strides = [1, 1]} : vector<64x96xf32> to vector<64x8xf32>
    %11 = arith.truncf %10 : vector<64x8xf32> to vector<64x8xbf16>
    %12 = vector.shape_cast %11 : vector<64x8xbf16> to vector<4x16x8xbf16>
    %13 = vector.extract_strided_slice %7 {offsets = [0, 32], sizes = [64, 8], strides = [1, 1]} : vector<64x96xf32> to vector<64x8xf32>
    %14 = arith.truncf %13 : vector<64x8xf32> to vector<64x8xbf16>
    %15 = vector.shape_cast %14 : vector<64x8xbf16> to vector<4x16x8xbf16>
    %16 = vector.extract_strided_slice %7 {offsets = [0, 64], sizes = [64, 8], strides = [1, 1]} : vector<64x96xf32> to vector<64x8xf32>
    %17 = arith.truncf %16 : vector<64x8xf32> to vector<64x8xbf16>
    %18 = vector.shape_cast %17 : vector<64x8xbf16> to vector<4x16x8xbf16>
    "tpu.trace_start"() <{level = 10 : i32, message = "wnd,wmd->wnm"}> : () -> ()
    %cst_12 = arith.constant dense<0.000000e+00> : vector<4x16x16xf32>
    %19 = tpu.matmul %12, %15, %cst_12 {dimension_numbers = #tpu.dot_dimension_numbers<[2], [2], [1], [1], [0, 0, 0, 1, 1, 1], [0], [0]>} : vector<4x16x8xbf16>, vector<4x16x8xbf16>, vector<4x16x16xf32> -> vector<4x16x16xf32>
    "tpu.trace_stop"() : () -> ()
    %20 = vector.extract_strided_slice %8 {offsets = [0, 0, 0], sizes = [1, 16, 16], strides = [1, 1, 1]} : vector<4x16x16xf32> to vector<1x16x16xf32>
    %21 = vector.shape_cast %20 : vector<1x16x16xf32> to vector<16x16xf32>
    %22 = vector.shape_cast %21 : vector<16x16xf32> to vector<1x16x16xf32>
    %23 = vector.broadcast %22 : vector<1x16x16xf32> to vector<4x16x16xf32>
    %24 = arith.addf %19, %23 : vector<4x16x16xf32>
    %25 = arith.addf %24, %9 : vector<4x16x16xf32>
    %cst_13 = arith.constant dense<0xFF800000> : vector<4x16xf32>
    %26 = vector.multi_reduction <maximumf>, %25, %cst_13 [2] : vector<4x16x16xf32> to vector<4x16xf32>
    %27 = vector.shape_cast %26 : vector<4x16xf32> to vector<4x16x1xf32>
    %28 = vector.broadcast %27 : vector<4x16x1xf32> to vector<4x16x16xf32>
    %29 = arith.subf %25, %28 : vector<4x16x16xf32>
    %30 = math.exp %29 : vector<4x16x16xf32>
    %cst_14 = arith.constant dense<0.000000e+00> : vector<4x16xf32>
    %31 = vector.multi_reduction <add>, %30, %cst_14 [2] : vector<4x16x16xf32> to vector<4x16xf32>
    %32 = vector.shape_cast %31 : vector<4x16xf32> to vector<4x16x1xf32>
    %33 = tpu.reciprocal %32 {approx = true} : vector<4x16x1xf32> -> vector<4x16x1xf32>
    %34 = vector.broadcast %33 : vector<4x16x1xf32> to vector<4x16x16xf32>
    %35 = arith.mulf %30, %34 : vector<4x16x16xf32>
    %36 = arith.truncf %35 : vector<4x16x16xf32> to vector<4x16x16xbf16>
    "tpu.trace_start"() <{level = 10 : i32, message = "wnm,wmd->wnd"}> : () -> ()
    %cst_15 = arith.constant dense<0.000000e+00> : vector<4x16x8xf32>
    %37 = tpu.matmul %36, %18, %cst_15 {dimension_numbers = #tpu.dot_dimension_numbers<[2], [1], [1], [2], [0, 0, 0, 1, 1, 2], [0], [0]>} : vector<4x16x16xbf16>, vector<4x16x8xbf16>, vector<4x16x8xf32> -> vector<4x16x8xf32>
    "tpu.trace_stop"() : () -> ()
    %38 = vector.shape_cast %37 : vector<4x16x8xf32> to vector<64x8xf32>
    %39 = arith.truncf %38 : vector<64x8xf32> to vector<64x8xbf16>
    %c0_16 = arith.constant 0 : index
    %c0_17 = arith.constant 0 : index
    %40 = vector.load %arg9[%c0_16, %c0_17] : memref<64x32xbf16, #tpu.memory_space<vmem>>, vector<64x8xbf16>
    tpu.vector_store %arg9[%c0_16, %c0_17], %39 {strides = array<i32>} : memref<64x32xbf16, #tpu.memory_space<vmem>>, vector<64x8xbf16>,
    %41 = vector.extract_strided_slice %7 {offsets = [0, 8], sizes = [64, 8], strides = [1, 1]} : vector<64x96xf32> to vector<64x8xf32>
    %42 = arith.truncf %41 : vector<64x8xf32> to vector<64x8xbf16>
    %43 = vector.shape_cast %42 : vector<64x8xbf16> to vector<4x16x8xbf16>
    %44 = vector.extract_strided_slice %7 {offsets = [0, 40], sizes = [64, 8], strides = [1, 1]} : vector<64x96xf32> to vector<64x8xf32>
    %45 = arith.truncf %44 : vector<64x8xf32> to vector<64x8xbf16>
    %46 = vector.shape_cast %45 : vector<64x8xbf16> to vector<4x16x8xbf16>
    %47 = vector.extract_strided_slice %7 {offsets = [0, 72], sizes = [64, 8], strides = [1, 1]} : vector<64x96xf32> to vector<64x8xf32>
    %48 = arith.truncf %47 : vector<64x8xf32> to vector<64x8xbf16>
    %49 = vector.shape_cast %48 : vector<64x8xbf16> to vector<4x16x8xbf16>
    "tpu.trace_start"() <{level = 10 : i32, message = "wnd,wmd->wnm"}> : () -> ()
    %cst_18 = arith.constant dense<0.000000e+00> : vector<4x16x16xf32>
    %50 = tpu.matmul %43, %46, %cst_18 {dimension_numbers = #tpu.dot_dimension_numbers<[2], [2], [1], [1], [0, 0, 0, 1, 1, 1], [0], [0]>} : vector<4x16x8xbf16>, vector<4x16x8xbf16>, vector<4x16x16xf32> -> vector<4x16x16xf32>
    "tpu.trace_stop"() : () -> ()
    %51 = vector.extract_strided_slice %8 {offsets = [1, 0, 0], sizes = [1, 16, 16], strides = [1, 1, 1]} : vector<4x16x16xf32> to vector<1x16x16xf32>
    %52 = vector.shape_cast %51 : vector<1x16x16xf32> to vector<16x16xf32>
    %53 = vector.shape_cast %52 : vector<16x16xf32> to vector<1x16x16xf32>
    %54 = vector.broadcast %53 : vector<1x16x16xf32> to vector<4x16x16xf32>
    %55 = arith.addf %50, %54 : vector<4x16x16xf32>
    %56 = arith.addf %55, %9 : vector<4x16x16xf32>
    %cst_19 = arith.constant dense<0xFF800000> : vector<4x16xf32>
    %57 = vector.multi_reduction <maximumf>, %56, %cst_19 [2] : vector<4x16x16xf32> to vector<4x16xf32>
    %58 = vector.shape_cast %57 : vector<4x16xf32> to vector<4x16x1xf32>
    %59 = vector.broadcast %58 : vector<4x16x1xf32> to vector<4x16x16xf32>
    %60 = arith.subf %56, %59 : vector<4x16x16xf32>
    %61 = math.exp %60 : vector<4x16x16xf32>
    %cst_20 = arith.constant dense<0.000000e+00> : vector<4x16xf32>
    %62 = vector.multi_reduction <add>, %61, %cst_20 [2] : vector<4x16x16xf32> to vector<4x16xf32>
    %63 = vector.shape_cast %62 : vector<4x16xf32> to vector<4x16x1xf32>
    %64 = tpu.reciprocal %63 {approx = true} : vector<4x16x1xf32> -> vector<4x16x1xf32>
    %65 = vector.broadcast %64 : vector<4x16x1xf32> to vector<4x16x16xf32>
    %66 = arith.mulf %61, %65 : vector<4x16x16xf32>
    %67 = arith.truncf %66 : vector<4x16x16xf32> to vector<4x16x16xbf16>
    "tpu.trace_start"() <{level = 10 : i32, message = "wnm,wmd->wnd"}> : () -> ()
    %cst_21 = arith.constant dense<0.000000e+00> : vector<4x16x8xf32>
    %68 = tpu.matmul %67, %49, %cst_21 {dimension_numbers = #tpu.dot_dimension_numbers<[2], [1], [1], [2], [0, 0, 0, 1, 1, 2], [0], [0]>} : vector<4x16x16xbf16>, vector<4x16x8xbf16>, vector<4x16x8xf32> -> vector<4x16x8xf32>
    "tpu.trace_stop"() : () -> ()
    %69 = vector.shape_cast %68 : vector<4x16x8xf32> to vector<64x8xf32>
    %70 = arith.truncf %69 : vector<64x8xf32> to vector<64x8xbf16>
    %c0_22 = arith.constant 0 : index
    %c8 = arith.constant 8 : index
    %71 = vector.load %arg9[%c0_22, %c8] : memref<64x32xbf16, #tpu.memory_space<vmem>>, vector<64x8xbf16>
    tpu.vector_store %arg9[%c0_22, %c8], %70 {strides = array<i32>} : memref<64x32xbf16, #tpu.memory_space<vmem>>, vector<64x8xbf16>,
    %72 = vector.extract_strided_slice %7 {offsets = [0, 16], sizes = [64, 8], strides = [1, 1]} : vector<64x96xf32> to vector<64x8xf32>
    %73 = arith.truncf %72 : vector<64x8xf32> to vector<64x8xbf16>
    %74 = vector.shape_cast %73 : vector<64x8xbf16> to vector<4x16x8xbf16>
    %75 = vector.extract_strided_slice %7 {offsets = [0, 48], sizes = [64, 8], strides = [1, 1]} : vector<64x96xf32> to vector<64x8xf32>
    %76 = arith.truncf %75 : vector<64x8xf32> to vector<64x8xbf16>
    %77 = vector.shape_cast %76 : vector<64x8xbf16> to vector<4x16x8xbf16>
    %78 = vector.extract_strided_slice %7 {offsets = [0, 80], sizes = [64, 8], strides = [1, 1]} : vector<64x96xf32> to vector<64x8xf32>
    %79 = arith.truncf %78 : vector<64x8xf32> to vector<64x8xbf16>
    %80 = vector.shape_cast %79 : vector<64x8xbf16> to vector<4x16x8xbf16>
    "tpu.trace_start"() <{level = 10 : i32, message = "wnd,wmd->wnm"}> : () -> ()
    %cst_23 = arith.constant dense<0.000000e+00> : vector<4x16x16xf32>
    %81 = tpu.matmul %74, %77, %cst_23 {dimension_numbers = #tpu.dot_dimension_numbers<[2], [2], [1], [1], [0, 0, 0, 1, 1, 1], [0], [0]>} : vector<4x16x8xbf16>, vector<4x16x8xbf16>, vector<4x16x16xf32> -> vector<4x16x16xf32>
    "tpu.trace_stop"() : () -> ()
    %82 = vector.extract_strided_slice %8 {offsets = [2, 0, 0], sizes = [1, 16, 16], strides = [1, 1, 1]} : vector<4x16x16xf32> to vector<1x16x16xf32>
    %83 = vector.shape_cast %82 : vector<1x16x16xf32> to vector<16x16xf32>
    %84 = vector.shape_cast %83 : vector<16x16xf32> to vector<1x16x16xf32>
    %85 = vector.broadcast %84 : vector<1x16x16xf32> to vector<4x16x16xf32>
    %86 = arith.addf %81, %85 : vector<4x16x16xf32>
    %87 = arith.addf %86, %9 : vector<4x16x16xf32>
    %cst_24 = arith.constant dense<0xFF800000> : vector<4x16xf32>
    %88 = vector.multi_reduction <maximumf>, %87, %cst_24 [2] : vector<4x16x16xf32> to vector<4x16xf32>
    %89 = vector.shape_cast %88 : vector<4x16xf32> to vector<4x16x1xf32>
    %90 = vector.broadcast %89 : vector<4x16x1xf32> to vector<4x16x16xf32>
    %91 = arith.subf %87, %90 : vector<4x16x16xf32>
    %92 = math.exp %91 : vector<4x16x16xf32>
    %cst_25 = arith.constant dense<0.000000e+00> : vector<4x16xf32>
    %93 = vector.multi_reduction <add>, %92, %cst_25 [2] : vector<4x16x16xf32> to vector<4x16xf32>
    %94 = vector.shape_cast %93 : vector<4x16xf32> to vector<4x16x1xf32>
    %95 = tpu.reciprocal %94 {approx = true} : vector<4x16x1xf32> -> vector<4x16x1xf32>
    %96 = vector.broadcast %95 : vector<4x16x1xf32> to vector<4x16x16xf32>
    %97 = arith.mulf %92, %96 : vector<4x16x16xf32>
    %98 = arith.truncf %97 : vector<4x16x16xf32> to vector<4x16x16xbf16>
    "tpu.trace_start"() <{level = 10 : i32, message = "wnm,wmd->wnd"}> : () -> ()
    %cst_26 = arith.constant dense<0.000000e+00> : vector<4x16x8xf32>
    %99 = tpu.matmul %98, %80, %cst_26 {dimension_numbers = #tpu.dot_dimension_numbers<[2], [1], [1], [2], [0, 0, 0, 1, 1, 2], [0], [0]>} : vector<4x16x16xbf16>, vector<4x16x8xbf16>, vector<4x16x8xf32> -> vector<4x16x8xf32>
    "tpu.trace_stop"() : () -> ()
    %100 = vector.shape_cast %99 : vector<4x16x8xf32> to vector<64x8xf32>
    %101 = arith.truncf %100 : vector<64x8xf32> to vector<64x8xbf16>
    %c0_27 = arith.constant 0 : index
    %c16 = arith.constant 16 : index
    %102 = vector.load %arg9[%c0_27, %c16] : memref<64x32xbf16, #tpu.memory_space<vmem>>, vector<64x8xbf16>
    tpu.vector_store %arg9[%c0_27, %c16], %101 {strides = array<i32>} : memref<64x32xbf16, #tpu.memory_space<vmem>>, vector<64x8xbf16>,
    %103 = vector.extract_strided_slice %7 {offsets = [0, 24], sizes = [64, 8], strides = [1, 1]} : vector<64x96xf32> to vector<64x8xf32>
    %104 = arith.truncf %103 : vector<64x8xf32> to vector<64x8xbf16>
    %105 = vector.shape_cast %104 : vector<64x8xbf16> to vector<4x16x8xbf16>
    %106 = vector.extract_strided_slice %7 {offsets = [0, 56], sizes = [64, 8], strides = [1, 1]} : vector<64x96xf32> to vector<64x8xf32>
    %107 = arith.truncf %106 : vector<64x8xf32> to vector<64x8xbf16>
    %108 = vector.shape_cast %107 : vector<64x8xbf16> to vector<4x16x8xbf16>
    %109 = vector.extract_strided_slice %7 {offsets = [0, 88], sizes = [64, 8], strides = [1, 1]} : vector<64x96xf32> to vector<64x8xf32>
    %110 = arith.truncf %109 : vector<64x8xf32> to vector<64x8xbf16>
    %111 = vector.shape_cast %110 : vector<64x8xbf16> to vector<4x16x8xbf16>
    "tpu.trace_start"() <{level = 10 : i32, message = "wnd,wmd->wnm"}> : () -> ()
    %cst_28 = arith.constant dense<0.000000e+00> : vector<4x16x16xf32>
    %112 = tpu.matmul %105, %108, %cst_28 {dimension_numbers = #tpu.dot_dimension_numbers<[2], [2], [1], [1], [0, 0, 0, 1, 1, 1], [0], [0]>} : vector<4x16x8xbf16>, vector<4x16x8xbf16>, vector<4x16x16xf32> -> vector<4x16x16xf32>
    "tpu.trace_stop"() : () -> ()
    %113 = vector.extract_strided_slice %8 {offsets = [3, 0, 0], sizes = [1, 16, 16], strides = [1, 1, 1]} : vector<4x16x16xf32> to vector<1x16x16xf32>
    %114 = vector.shape_cast %113 : vector<1x16x16xf32> to vector<16x16xf32>
    %115 = vector.shape_cast %114 : vector<16x16xf32> to vector<1x16x16xf32>
    %116 = vector.broadcast %115 : vector<1x16x16xf32> to vector<4x16x16xf32>
    %117 = arith.addf %112, %116 : vector<4x16x16xf32>
    %118 = arith.addf %117, %9 : vector<4x16x16xf32>
    %cst_29 = arith.constant dense<0xFF800000> : vector<4x16xf32>
    %119 = vector.multi_reduction <maximumf>, %118, %cst_29 [2] : vector<4x16x16xf32> to vector<4x16xf32>
    %120 = vector.shape_cast %119 : vector<4x16xf32> to vector<4x16x1xf32>
    %121 = vector.broadcast %120 : vector<4x16x1xf32> to vector<4x16x16xf32>
    %122 = arith.subf %118, %121 : vector<4x16x16xf32>
    %123 = math.exp %122 : vector<4x16x16xf32>
    %cst_30 = arith.constant dense<0.000000e+00> : vector<4x16xf32>
    %124 = vector.multi_reduction <add>, %123, %cst_30 [2] : vector<4x16x16xf32> to vector<4x16xf32>
    %125 = vector.shape_cast %124 : vector<4x16xf32> to vector<4x16x1xf32>
    %126 = tpu.reciprocal %125 {approx = true} : vector<4x16x1xf32> -> vector<4x16x1xf32>
    %127 = vector.broadcast %126 : vector<4x16x1xf32> to vector<4x16x16xf32>
    %128 = arith.mulf %123, %127 : vector<4x16x16xf32>
    %129 = arith.truncf %128 : vector<4x16x16xf32> to vector<4x16x16xbf16>
    "tpu.trace_start"() <{level = 10 : i32, message = "wnm,wmd->wnd"}> : () -> ()
    %cst_31 = arith.constant dense<0.000000e+00> : vector<4x16x8xf32>
    %130 = tpu.matmul %129, %111, %cst_31 {dimension_numbers = #tpu.dot_dimension_numbers<[2], [1], [1], [2], [0, 0, 0, 1, 1, 2], [0], [0]>} : vector<4x16x16xbf16>, vector<4x16x8xbf16>, vector<4x16x8xf32> -> vector<4x16x8xf32>
    "tpu.trace_stop"() : () -> ()
    %131 = vector.shape_cast %130 : vector<4x16x8xf32> to vector<64x8xf32>
    %132 = arith.truncf %131 : vector<64x8xf32> to vector<64x8xbf16>
    %c0_32 = arith.constant 0 : index
    %c24 = arith.constant 24 : index
    %133 = vector.load %arg9[%c0_32, %c24] : memref<64x32xbf16, #tpu.memory_space<vmem>>, vector<64x8xbf16>
    tpu.vector_store %arg9[%c0_32, %c24], %132 {strides = array<i32>} : memref<64x32xbf16, #tpu.memory_space<vmem>>, vector<64x8xbf16>,
    %c0_33 = arith.constant 0 : index
    %c0_34 = arith.constant 0 : index
    %134 = vector.load %arg9[%c0_33, %c0_34] : memref<64x32xbf16, #tpu.memory_space<vmem>>, vector<64x32xbf16>
    %c0_35 = arith.constant 0 : index
    %c0_36 = arith.constant 0 : index
    %135 = vector.load %arg6[%c0_35, %c0_36] : memref<32x32xbf16, #tpu.memory_space<vmem>>, vector<32x32xbf16>
    %cst_37 = arith.constant dense<0.000000e+00> : vector<64x32xf32>
    %136 = tpu.matmul %134, %135, %cst_37 {dimension_numbers = #tpu.dot_dimension_numbers<[1], [0], [0], [1], [0, 0, 1, 1], [], []>} : vector<64x32xbf16>, vector<32x32xbf16>, vector<64x32xf32> -> vector<64x32xf32>
    %c0_38 = arith.constant 0 : index
    %c0_39 = arith.constant 0 : index
    %137 = vector.load %arg7[%c0_38, %c0_39] : memref<1x32xf32, #tpu.memory_space<vmem>>, vector<1x32xf32>
    %138 = vector.broadcast %137 : vector<1x32xf32> to vector<64x32xf32>
    %139 = arith.addf %136, %138 : vector<64x32xf32>
    %c0_40 = arith.constant 0 : index
    %c0_41 = arith.constant 0 : index
    %c0_42 = arith.constant 0 : index
    %140 = vector.load %arg8[%c0_40, %c0_41, %c0_42] : memref<1x64x32xf32, #tpu.memory_space<vmem>>, vector<1x64x32xf32>
    %141 = vector.shape_cast %140 : vector<1x64x32xf32> to vector<64x32xf32>
    %142 = vector.shape_cast %139 : vector<64x32xf32> to vector<1x64x32xf32>
    tpu.vector_store %arg8[%c0_40, %c0_41, %c0_42], %142 {strides = array<i32>} : memref<1x64x32xf32, #tpu.memory_space<vmem>>, vector<1x64x32xf32>,
    return
  }
  func.func @transform_0(%arg0: i32) -> (i32, i32, i32) {
    %c0_i32 = arith.constant 0 : i32
    %c0_i32_0 = arith.constant 0 : i32
    %c0_i32_1 = arith.constant 0 : i32
    return %arg0, %c0_i32, %c0_i32_0 : i32, i32, i32
  }
  func.func @transform_1(%arg0: i32) -> (i32, i32) {
    %c0_i32 = arith.constant 0 : i32
    %c0_i32_0 = arith.constant 0 : i32
    %c0_i32_1 = arith.constant 0 : i32
    return %c0_i32, %c0_i32_0 : i32, i32
  }
  func.func @transform_2(%arg0: i32) -> (i32, i32) {
    %c0_i32 = arith.constant 0 : i32
    %c0_i32_0 = arith.constant 0 : i32
    %c0_i32_1 = arith.constant 0 : i32
    return %c0_i32, %c0_i32_0 : i32, i32
  }
  func.func @transform_3(%arg0: i32) -> (i32, i32, i32) {
    %c0_i32 = arith.constant 0 : i32
    %c0_i32_0 = arith.constant 0 : i32
    %c0_i32_1 = arith.constant 0 : i32
    %c0_i32_2 = arith.constant 0 : i32
    return %c0_i32, %c0_i32_0, %c0_i32_1 : i32, i32, i32
  }
  func.func @transform_4(%arg0: i32) -> (i32, i32, i32) {
    %c1_i32 = arith.constant 1 : i32
    %c0_i32 = arith.constant 0 : i32
    %0 = arith.cmpi eq, %c1_i32, %c0_i32 : i32
    %c1_i32_0 = arith.constant 1 : i32
    %1 = arith.select %0, %c1_i32_0, %c1_i32 : i32
    %2 = arith.remsi %arg0, %1 : i32
    %c0_i32_1 = arith.constant 0 : i32
    %3 = arith.cmpi ne, %2, %c0_i32_1 : i32
    %c0_i32_2 = arith.constant 0 : i32
    %4 = arith.cmpi slt, %2, %c0_i32_2 : i32
    %c0_i32_3 = arith.constant 0 : i32
    %5 = arith.cmpi slt, %1, %c0_i32_3 : i32
    %6 = arith.xori %4, %5 : i1
    %7 = arith.andi %6, %3 : i1
    %8 = arith.addi %2, %1 : i32
    %9 = arith.select %7, %8, %2 : i32
    %c0_i32_4 = arith.constant 0 : i32
    %c0_i32_5 = arith.constant 0 : i32
    %c0_i32_6 = arith.constant 0 : i32
    return %9, %c0_i32_4, %c0_i32_5 : i32, i32, i32
  }
  func.func @transform_5(%arg0: i32) -> (i32, i32) {
    %c0_i32 = arith.constant 0 : i32
    %c0_i32_0 = arith.constant 0 : i32
    %c0_i32_1 = arith.constant 0 : i32
    return %c0_i32, %c0_i32_0 : i32, i32
  }
  func.func @transform_6(%arg0: i32) -> (i32, i32) {
    %c0_i32 = arith.constant 0 : i32
    %c0_i32_0 = arith.constant 0 : i32
    %c0_i32_1 = arith.constant 0 : i32
    return %c0_i32, %c0_i32_0 : i32, i32
  }
  func.func @transform_7(%arg0: i32) -> (i32, i32, i32) {
    %c0_i32 = arith.constant 0 : i32
    %c0_i32_0 = arith.constant 0 : i32
    %c0_i32_1 = arith.constant 0 : i32
    return %arg0, %c0_i32, %c0_i32_0 : i32, i32, i32
  }
}

</mosaic_0001>

<llo_original>
// kernel: tpu_custom_call.1
$region0: #{tpu_custom_call.1}
  #allocation0 [shape = 'u32[]', space=smem, size = 0x4, offset = 0x4, fixed_abs, tag = 'smem constant byte address 0x4 - core index']
  #allocation1 [shape = 'u32[72,128]{1,0:T(1,128)}', space=vmem, size = 0x9000, scoped, tag = 'internal scratch']
  #allocation2 [shape = 'bf16[64,32]{1,0:T(8,128)(2,1)}', space=vmem, size = 0x4000, scoped, tag = 'scratch operand']
  %s0 = inlined_call_operand.vmem [shape: f32[2,64,32], index: 0, kind: input, shape index: {}]
  %s1 = inlined_call_operand.vmem [shape: bf16[32,96], index: 1, kind: input, shape index: {}]
  %s2 = inlined_call_operand.vmem [shape: f32[1,96], index: 2, kind: input, shape index: {}]
  %s3 = inlined_call_operand.vmem [shape: f32[4,16,16], index: 3, kind: input, shape index: {}]
  %s4 = inlined_call_operand.vmem [shape: f32[4,16,16], index: 4, kind: input, shape index: {}]
  %s5 = inlined_call_operand.vmem [shape: bf16[32,32], index: 5, kind: input, shape index: {}]
  %s6 = inlined_call_operand.vmem [shape: f32[1,32], index: 6, kind: input, shape index: {}]
  %s7 = inlined_call_operand.vmem [shape: f32[2,64,32], index: 7, kind: output, shape index: {}]
  %s8 = sld [smem:[#allocation0]]
  $region61: #{tpu_custom_call.1} parent=0
    _
  %s10 = ssub.s32 1, %s8
  %s11 = scalar_select 0, %s10, %s8
  loop: start=0, step=1, limit=4
  $region2: #{tpu_custom_call.1} parent=0 // loop_pre_header
    _
  $region3: #{tpu_custom_call.1} parent=0 // loop_header
    %s13 = sphi 0, %s17
    %p14 = scmp.ge.s32.totalorder %s13, 4
    %s23 = sphi 0, %s25
    %s26 = sphi 0, %s23
    %s27 = sphi 0, %s26
    %s43 = sphi 0, %s27
    %s47 = sphi 0, %s47
    %s49 = sphi 0, %s47
    %s50 = sphi 0, %s49
    %s64 = sphi 0, %s50
    %s68 = sphi 0, %s68
    %s70 = sphi 0, %s68
    %s71 = sphi 0, %s70
    %s85 = sphi 0, %s71
    %s89 = sphi 0, %s89
    %s91 = sphi 0, %s89
    %s92 = sphi 0, %s91
    %s106 = sphi 0, %s92
    %s110 = sphi 0, %s110
    %s112 = sphi 0, %s110
    %s113 = sphi 0, %s112
    %s127 = sphi 0, %s113
    %s131 = sphi 0, %s131
    %s133 = sphi 0, %s131
    %s134 = sphi 0, %s133
    %s148 = sphi 0, %s134
    %s152 = sphi 0, %s152
    %s154 = sphi 0, %s152
    %s155 = sphi 0, %s154
    %s169 = sphi 0, %s155
    %s175 = sphi 0, %s177
    %s178 = sphi 0, %s175
    %s179 = sphi 0, %s178
    %s195 = sphi 0, %s179
  $region4: #{tpu_custom_call.1} parent=0 // loop_header_branch
    %16 = sbr.rel (%p14) target = $region8
  $region5: #{tpu_custom_call.1} parent=0 // loop_body
    %s18 = ssub.s32 %s13, 1
    %s19 = ssub.s32 %s13, 2
    %s20 = sadd.s32 %s13, 1
    %s21 = ssub.s32 %s13, %s20
    %p22 = scmp.eq.s32.totalorder %s21, 0
    %s24 = sadd.s32 %s23, 1
    %s25 = scalar_select %p22, %s23, %s24
    %p28 = pneg %p22
    %p29 = scmp.eq.s32.totalorder %s13, 1
    %p30 = por %p28, %p29
    %p31 = scmp.ne.s32.totalorder %s23, %s26
    %p32 = scmp.eq.s32.totalorder %s13, 0
    %p33 = por %p31, %p32
    %p34 = scmp.ne.s32.totalorder %s23, %s26
    %p35 = scmp.eq.s32.totalorder %s18, 1
    %p36 = por %p34, %p35
    %p37 = scmp.ne.s32.totalorder %s26, %s27
    %p38 = scmp.eq.s32.totalorder %s18, 0
    %p39 = por %p37, %p38
    %p40 = scmp.ne.s32.totalorder %s26, %s27
    %p41 = scmp.eq.s32.totalorder %s19, 1
    %p42 = por %p40, %p41
    %p44 = scmp.ne.s32.totalorder %s27, %s43
    %p45 = scmp.eq.s32.totalorder %s19, 0
    %p46 = por %p44, %p45
    %s48 = sadd.s32 %s47, 1
    %p51 = scmp.eq.s32.totalorder %s13, 1
    %p52 = scmp.ne.s32.totalorder %s47, %s49
    %p53 = scmp.eq.s32.totalorder %s13, 0
    %p54 = por %p52, %p53
    %p55 = scmp.ne.s32.totalorder %s47, %s49
    %p56 = scmp.eq.s32.totalorder %s18, 1
    %p57 = por %p55, %p56
    %p58 = scmp.ne.s32.totalorder %s49, %s50
    %p59 = scmp.eq.s32.totalorder %s18, 0
    %p60 = por %p58, %p59
    %p61 = scmp.ne.s32.totalorder %s49, %s50
    %p62 = scmp.eq.s32.totalorder %s19, 1
    %p63 = por %p61, %p62
    %p65 = scmp.ne.s32.totalorder %s50, %s64
    %p66 = scmp.eq.s32.totalorder %s19, 0
    %p67 = por %p65, %p66
    %s69 = sadd.s32 %s68, 1
    %p72 = scmp.eq.s32.totalorder %s13, 1
    %p73 = scmp.ne.s32.totalorder %s68, %s70
    %p74 = scmp.eq.s32.totalorder %s13, 0
    %p75 = por %p73, %p74
    %p76 = scmp.ne.s32.totalorder %s68, %s70
    %p77 = scmp.eq.s32.totalorder %s18, 1
    %p78 = por %p76, %p77
    %p79 = scmp.ne.s32.totalorder %s70, %s71
    %p80 = scmp.eq.s32.totalorder %s18, 0
    %p81 = por %p79, %p80
    %p82 = scmp.ne.s32.totalorder %s70, %s71
    %p83 = scmp.eq.s32.totalorder %s19, 1
    %p84 = por %p82, %p83
    %p86 = scmp.ne.s32.totalorder %s71, %s85
    %p87 = scmp.eq.s32.totalorder %s19, 0
    %p88 = por %p86, %p87
    %s90 = sadd.s32 %s89, 1
    %p93 = scmp.eq.s32.totalorder %s13, 1
    %p94 = scmp.ne.s32.totalorder %s89, %s91
    %p95 = scmp.eq.s32.totalorder %s13, 0
    %p96 = por %p94, %p95
    %p97 = scmp.ne.s32.totalorder %s89, %s91
    %p98 = scmp.eq.s32.totalorder %s18, 1
    %p99 = por %p97, %p98
    %p100 = scmp.ne.s32.totalorder %s91, %s92
    %p101 = scmp.eq.s32.totalorder %s18, 0
    %p102 = por %p100, %p101
    %p103 = scmp.ne.s32.totalorder %s91, %s92
    %p104 = scmp.eq.s32.totalorder %s19, 1
    %p105 = por %p103, %p104
    %p107 = scmp.ne.s32.totalorder %s92, %s106
    %p108 = scmp.eq.s32.totalorder %s19, 0
    %p109 = por %p107, %p108
    %s111 = sadd.s32 %s110, 1
    %p114 = scmp.eq.s32.totalorder %s13, 1
    %p115 = scmp.ne.s32.totalorder %s110, %s112
    %p116 = scmp.eq.s32.totalorder %s13, 0
    %p117 = por %p115, %p116
    %p118 = scmp.ne.s32.totalorder %s110, %s112
    %p119 = scmp.eq.s32.totalorder %s18, 1
    %p120 = por %p118, %p119
    %p121 = scmp.ne.s32.totalorder %s112, %s113
    %p122 = scmp.eq.s32.totalorder %s18, 0
    %p123 = por %p121, %p122
    %p124 = scmp.ne.s32.totalorder %s112, %s113
    %p125 = scmp.eq.s32.totalorder %s19, 1
    %p126 = por %p124, %p125
    %p128 = scmp.ne.s32.totalorder %s113, %s127
    %p129 = scmp.eq.s32.totalorder %s19, 0
    %p130 = por %p128, %p129
    %s132 = sadd.s32 %s131, 1
    %p135 = scmp.eq.s32.totalorder %s13, 1
    %p136 = scmp.ne.s32.totalorder %s131, %s133
    %p137 = scmp.eq.s32.totalorder %s13, 0
    %p138 = por %p136, %p137
    %p139 = scmp.ne.s32.totalorder %s131, %s133
    %p140 = scmp.eq.s32.totalorder %s18, 1
    %p141 = por %p139, %p140
    %p142 = scmp.ne.s32.totalorder %s133, %s134
    %p143 = scmp.eq.s32.totalorder %s18, 0
    %p144 = por %p142, %p143
    %p145 = scmp.ne.s32.totalorder %s133, %s134
    %p146 = scmp.eq.s32.totalorder %s19, 1
    %p147 = por %p145, %p146
    %p149 = scmp.ne.s32.totalorder %s134, %s148
    %p150 = scmp.eq.s32.totalorder %s19, 0
    %p151 = por %p149, %p150
    %s153 = sadd.s32 %s152, 1
    %p156 = scmp.eq.s32.totalorder %s13, 1
    %p157 = scmp.ne.s32.totalorder %s152, %s154
    %p158 = scmp.eq.s32.totalorder %s13, 0
    %p159 = por %p157, %p158
    %p160 = scmp.ne.s32.totalorder %s152, %s154
    %p161 = scmp.eq.s32.totalorder %s18, 1
    %p162 = por %p160, %p161
    %p163 = scmp.ne.s32.totalorder %s154, %s155
    %p164 = scmp.eq.s32.totalorder %s18, 0
    %p165 = por %p163, %p164
    %p166 = scmp.ne.s32.totalorder %s154, %s155
    %p167 = scmp.eq.s32.totalorder %s19, 1
    %p168 = por %p166, %p167
    %p170 = scmp.ne.s32.totalorder %s155, %s169
    %p171 = scmp.eq.s32.totalorder %s19, 0
    %p172 = por %p170, %p171
    %s173 = ssub.s32 %s13, %s20
    %p174 = scmp.eq.s32.totalorder %s173, 0
    %s176 = sadd.s32 %s175, 1
    %s177 = scalar_select %p174, %s175, %s176
    %p180 = pneg %p174
    %p181 = scmp.eq.s32.totalorder %s13, 1
    %p182 = por %p180, %p181
    %p183 = scmp.ne.s32.totalorder %s175, %s178
    %p184 = scmp.eq.s32.totalorder %s13, 0
    %p185 = por %p183, %p184
    %p186 = scmp.ne.s32.totalorder %s175, %s178
    %p187 = scmp.eq.s32.totalorder %s18, 1
    %p188 = por %p186, %p187
    %p189 = scmp.ne.s32.totalorder %s178, %s179
    %p190 = scmp.eq.s32.totalorder %s18, 0
    %p191 = por %p189, %p190
    %p192 = scmp.ne.s32.totalorder %s178, %s179
    %p193 = scmp.eq.s32.totalorder %s19, 1
    %p194 = por %p192, %p193
    %p196 = scmp.ne.s32.totalorder %s179, %s195
    %p197 = scmp.eq.s32.totalorder %s19, 0
    %p198 = por %p196, %p197
    %p199 = scmp.le.s32.totalorder 1, %s13
    %p200 = scmp.lt.s32.totalorder %s13, 3
    %p201 = pnand %p199, %p200
    %p202 = pneg %p201
    // Predicated region
    $region9: #{tpu_custom_call.1} parent=5 // pred_check
      _
    $region10: #{tpu_custom_call.1} parent=5 // pred_check_branch
      %204 = sbr.rel (%p201) target = $region12
    $region11: #{tpu_custom_call.1} parent=5 // pred_region
      %s205 = ssub.s32 %s13, 1
      // Predicated region
      $region13: #{tpu_custom_call.1} parent=11 // pred_check
        %p206 = pneg %p60
      $region14: #{tpu_custom_call.1} parent=11 // pred_check_branch
        %208 = sbr.rel (%p206) target = $region16
      $region15: #{tpu_custom_call.1} parent=11 // pred_region
        _
      $region16: #{tpu_custom_call.1} parent=11 // pred_fallthru
        _
      // Predicated region
      $region17: #{tpu_custom_call.1} parent=11 // pred_check
        %p209 = pneg %p81
      $region18: #{tpu_custom_call.1} parent=11 // pred_check_branch
        %211 = sbr.rel (%p209) target = $region20
      $region19: #{tpu_custom_call.1} parent=11 // pred_region
        _
      $region20: #{tpu_custom_call.1} parent=11 // pred_fallthru
        _
      // Predicated region
      $region21: #{tpu_custom_call.1} parent=11 // pred_check
        %p212 = pneg %p102
      $region22: #{tpu_custom_call.1} parent=11 // pred_check_branch
        %214 = sbr.rel (%p212) target = $region24
      $region23: #{tpu_custom_call.1} parent=11 // pred_region
        _
      $region24: #{tpu_custom_call.1} parent=11 // pred_fallthru
        _
      // Predicated region
      $region25: #{tpu_custom_call.1} parent=11 // pred_check
        %p215 = pneg %p123
      $region26: #{tpu_custom_call.1} parent=11 // pred_check_branch
        %217 = sbr.rel (%p215) target = $region28
      $region27: #{tpu_custom_call.1} parent=11 // pred_region
        _
      $region28: #{tpu_custom_call.1} parent=11 // pred_fallthru
        _
      // Predicated region
      $region29: #{tpu_custom_call.1} parent=11 // pred_check
        %p218 = pneg %p144
      $region30: #{tpu_custom_call.1} parent=11 // pred_check_branch
        %220 = sbr.rel (%p218) target = $region32
      $region31: #{tpu_custom_call.1} parent=11 // pred_region
        _
      $region32: #{tpu_custom_call.1} parent=11 // pred_fallthru
        _
      // Predicated region
      $region33: #{tpu_custom_call.1} parent=11 // pred_check
        %p221 = pneg %p165
      $region34: #{tpu_custom_call.1} parent=11 // pred_check_branch
        %223 = sbr.rel (%p221) target = $region36
      $region35: #{tpu_custom_call.1} parent=11 // pred_region
        _
      $region36: #{tpu_custom_call.1} parent=11 // pred_fallthru
        _
    $region12: #{tpu_custom_call.1} parent=5 // pred_fallthru
      _
    %p224 = scmp.lt.s32.totalorder %s13, 2
    // Predicated region
    $region37: #{tpu_custom_call.1} parent=5 // pred_check
      %p225 = pneg %p224
    $region38: #{tpu_custom_call.1} parent=5 // pred_check_branch
      %227 = sbr.rel (%p225) target = $region40
    $region39: #{tpu_custom_call.1} parent=5 // pred_region
      // Predicated region
      $region41: #{tpu_custom_call.1} parent=39 // pred_check
        %p228 = pneg %p33
      $region42: #{tpu_custom_call.1} parent=39 // pred_check_branch
        %230 = sbr.rel (%p228) target = $region44
      $region43: #{tpu_custom_call.1} parent=39 // pred_region
        %p231 = scmp.lt.s32.totalorder %s13, 1
        %s232 = scalar_select %p231, %s13, 1
        %s233 = smul.addr %s232, 8
        %s234 = smul.addr %s233, 8
        %s235 = scalar_lea.vmem %s0, %s234
      $region44: #{tpu_custom_call.1} parent=39 // pred_fallthru
        _
    $region40: #{tpu_custom_call.1} parent=5 // pred_fallthru
      _
    %p236 = scmp.le.s32.totalorder 1, %s13
    %p237 = scmp.lt.s32.totalorder %s13, 3
    %p238 = pnand %p236, %p237
    %p239 = pneg %p238
    // Predicated region
    $region45: #{tpu_custom_call.1} parent=5 // pred_check
      _
    $region46: #{tpu_custom_call.1} parent=5 // pred_check_branch
      %241 = sbr.rel (%p238) target = $region48
    $region47: #{tpu_custom_call.1} parent=5 // pred_region
      %s242 = ssub.s32 %s13, 1
      %p243 = scmp.lt.s32.totalorder %s18, 1
      %s244 = scalar_select %p243, %s18, 1
      %s245 = smul.addr %s244, 8
      %s246 = smul.addr %s245, 8
      %s247 = scalar_lea.vmem %s0, %s246
      %p248 = pneg %p39
      %p249 = pneg %p36
      %p250 = pneg %p60
      %p251 = pneg %p57
      %p252 = pneg %p81
      %p253 = pneg %p78
      %p254 = pneg %p102
      %p255 = pneg %p99
      %p256 = pneg %p123
      %p257 = pneg %p120
      %p258 = pneg %p144
      %p259 = pneg %p141
      %p260 = pneg %p165
      %p261 = pneg %p162
      %p262 = pneg %p191
      %p263 = pneg %p188
      %p264 = scmp.lt.s32.totalorder %s18, 1
      %s265 = scalar_select %p264, %s18, 1
      %s266 = smul.addr %s265, 8
      %s267 = smul.addr %s266, 8
      %s268 = scalar_lea.vmem %s7, %s267
      %p269 = scmp.lt.s32.totalorder %s18, 1
      %s270 = scalar_select %p269, %s18, 1
      %s271 = smul.addr %s270, 8
      %s272 = smul.addr %s271, 8
      %s273 = scalar_lea.vmem %s0, %s272
      %p274 = scmp.lt.s32.totalorder %s18, 1
      %s275 = scalar_select %p274, %s18, 1
      %s276 = smul.addr %s275, 8
      %s277 = smul.addr %s276, 8
      %s278 = scalar_lea.vmem %s7, %s277
      %v280 = vld [vmem:[%s273] sm:$0xff]
      %v281 = vld [vmem:[%s273 + $0x8] sm:$0xff]
      %v282 = vld [vmem:[%s273 + $0x10] sm:$0xff]
      %v283 = vld [vmem:[%s273 + $0x18] sm:$0xff]
      %v284 = vld [vmem:[%s273 + $0x20] sm:$0xff]
      %v285 = vld [vmem:[%s273 + $0x28] sm:$0xff]
      %v286 = vld [vmem:[%s273 + $0x30] sm:$0xff]
      %v287 = vld [vmem:[%s273 + $0x38] sm:$0xff]
      %v288 = vpack.c.bf16 %v281, %v280
      %v289 = vpack.c.bf16 %v283, %v282
      %v290 = vpack.c.bf16 %v285, %v284
      %v291 = vpack.c.bf16 %v287, %v286
      %v292 = vld [vmem:[%s1] sm:$0xf]
      %v293 = vld [vmem:[%s1 + $0x4] sm:$0xf]
      %v294 = vld [vmem:[%s1 + $0x8] sm:$0xf]
      %v295 = vld [vmem:[%s1 + $0xc] sm:$0xf]
      %v296 = vld [vmem:[%s2] sm:$0x1]
      %v298 = vperm.slane %v296, 0
      %v304 = vunpack.c.l.b16 %v292
      %v305 = vunpack.c.l.b16 %v293
      %v306 = vunpack.c.l.b16 %v294
      %v307 = vunpack.c.l.b16 %v295
      %v308 = vpack.c.b16 %v305, %v304
      %v309 = vpack.c.b16 %v307, %v306
      %vm312 = vcmask 261120
      %v314 = vsel %vm312, %v288, 0
      %v317 = vsel %vm312, %v289, 0
      %v320 = vsel %vm312, %v290, 0
      %v323 = vsel %vm312, %v291, 0
      %325 = vmatpush.bf16.msra.mxu0 0
      %326 = vmatpush.bf16.msra.mxu0 0
      %327 = vmatpush.bf16.msra.mxu0 0
      %328 = vmatpush.bf16.msra.mxu0 0
      %329 = vmatpush.bf16.msra.mxu0 0
      %330 = vmatpush.bf16.msra.mxu0 0
      %331 = vmatpush.bf16.msra.mxu0 %v309
      %332 = vmatpush.bf16.msra.mxu0 %v308
      %333 = vmatmul.bf16.gmra.mxu0 %v314
      %v334 = vpop.f32.mrf.mxu0
      %v335 = vadd.f32 %v298, %v334
      %v336 = vpop.f32.mrf.mxu0
      %v337 = vadd.f32 %v298, %v336
      %338 = vmatmul.bf16.gmra.mxu0 %v317
      %v339 = vpop.f32.mrf.mxu0
      %v340 = vadd.f32 %v298, %v339
      %v341 = vpop.f32.mrf.mxu0
      %v342 = vadd.f32 %v298, %v341
      %343 = vmatmul.bf16.gmra.mxu0 %v320
      %v344 = vpop.f32.mrf.mxu0
      %v345 = vadd.f32 %v298, %v344
      %v346 = vpop.f32.mrf.mxu0
      %v347 = vadd.f32 %v298, %v346
      %348 = vmatmul.bf16.gmra.mxu0 %v323
      %v349 = vpop.f32.mrf.mxu0
      %v350 = vadd.f32 %v298, %v349
      %v351 = vpop.f32.mrf.mxu0
      %v352 = vadd.f32 %v298, %v351
      %353 = vdwg.mxu0
      %v354 = vld [vmem:[%s3] sm:$0xff]
      %v355 = vld [vmem:[%s3 + $0x8] sm:$0xff]
      %v356 = vld [vmem:[%s3 + $0x10] sm:$0xff]
      %v357 = vld [vmem:[%s3 + $0x18] sm:$0xff]
      %v358 = vld [vmem:[%s3 + $0x20] sm:$0xff]
      %v359 = vld [vmem:[%s3 + $0x28] sm:$0xff]
      %v360 = vld [vmem:[%s3 + $0x30] sm:$0xff]
      %v361 = vld [vmem:[%s3 + $0x38] sm:$0xff]
      %v362 = vld [vmem:[%s4] sm:$0xff]
      %v363 = vld [vmem:[%s4 + $0x8] sm:$0xff]
      %v364 = vld [vmem:[%s4 + $0x10] sm:$0xff]
      %v365 = vld [vmem:[%s4 + $0x18] sm:$0xff]
      %v366 = vld [vmem:[%s4 + $0x20] sm:$0xff]
      %v367 = vld [vmem:[%s4 + $0x28] sm:$0xff]
      %v368 = vld [vmem:[%s4 + $0x30] sm:$0xff]
      %v369 = vld [vmem:[%s4 + $0x38] sm:$0xff]
      %v370 = vpack.c.bf16 %v335, %v335
      %v371 = vpack.c.bf16 %v337, %v337
      %v372 = vpack.c.bf16 %v340, %v340
      %v373 = vpack.c.bf16 %v342, %v342
      %v374 = vpack.c.bf16 %v345, %v345
      %v375 = vpack.c.bf16 %v347, %v347
      %v376 = vpack.c.bf16 %v350, %v350
      %v377 = vpack.c.bf16 %v352, %v352
      %v380 = vunpack.c.l.b16 %v370
      %v381 = vunpack.c.l.b16 %v371
      %v382 = vpack.c.b16 %v381, %v380
      %383 = vrot.lane.b32.xlu0 %v382, 96
      %v384 = vpop.permute.xlu0 %383
      %vm385 = vcmask 64512
      %v387 = vsel %vm385, %v382, 0
      %v390 = vsel %vm385, %v384, 0
      %392 = vmatpush.bf16.xpose.msra.mxu0 0
      %393 = vmatpush.bf16.xpose.msra.mxu0 0
      %394 = vmatpush.bf16.xpose.msra.mxu0 0
      %395 = vmatpush.bf16.xpose.msra.mxu0 0
      %396 = vmatpush.bf16.xpose.msra.mxu0 0
      %397 = vmatpush.bf16.xpose.msra.mxu0 0
      %398 = vmatpush.bf16.xpose.msra.mxu0 0
      %399 = vmatpush.bf16.xpose.msra.mxu0 %v390
      %400 = vmatmul.bf16.gmra.mxu0 %v387
      %v401 = vpop.f32.mrf.mxu0
      %v402 = vadd.f32 %v354, %v401
      %v403 = vpop.f32.mrf.mxu0
      %v404 = vadd.f32 %v355, %v403
      %405 = vdwg.mxu0
      %v408 = vunpack.c.l.b16 %v372
      %v409 = vunpack.c.l.b16 %v373
      %v410 = vpack.c.b16 %v409, %v408
      %411 = vrot.lane.b32.xlu0 %v410, 96
      %v412 = vpop.permute.xlu0 %411
      %v414 = vsel %vm385, %v410, 0
      %v417 = vsel %vm385, %v412, 0
      %419 = vmatpush.bf16.xpose.msra.mxu0 0
      %420 = vmatpush.bf16.xpose.msra.mxu0 0
      %421 = vmatpush.bf16.xpose.msra.mxu0 0
      %422 = vmatpush.bf16.xpose.msra.mxu0 0
      %423 = vmatpush.bf16.xpose.msra.mxu0 0
      %424 = vmatpush.bf16.xpose.msra.mxu0 0
      %425 = vmatpush.bf16.xpose.msra.mxu0 0
      %426 = vmatpush.bf16.xpose.msra.mxu0 %v417
      %427 = vmatmul.bf16.gmra.mxu0 %v414
      %v428 = vpop.f32.mrf.mxu0
      %v429 = vadd.f32 %v354, %v428
      %v430 = vpop.f32.mrf.mxu0
      %v431 = vadd.f32 %v355, %v430
      %432 = vdwg.mxu0
      %v435 = vunpack.c.l.b16 %v374
      %v436 = vunpack.c.l.b16 %v375
      %v437 = vpack.c.b16 %v436, %v435
      %438 = vrot.lane.b32.xlu0 %v437, 96
      %v439 = vpop.permute.xlu0 %438
      %v441 = vsel %vm385, %v437, 0
      %v444 = vsel %vm385, %v439, 0
      %446 = vmatpush.bf16.xpose.msra.mxu0 0
      %447 = vmatpush.bf16.xpose.msra.mxu0 0
      %448 = vmatpush.bf16.xpose.msra.mxu0 0
      %449 = vmatpush.bf16.xpose.msra.mxu0 0
      %450 = vmatpush.bf16.xpose.msra.mxu0 0
      %451 = vmatpush.bf16.xpose.msra.mxu0 0
      %452 = vmatpush.bf16.xpose.msra.mxu0 0
      %453 = vmatpush.bf16.xpose.msra.mxu0 %v444
      %454 = vmatmul.bf16.gmra.mxu0 %v441
      %v455 = vpop.f32.mrf.mxu0
      %v456 = vadd.f32 %v354, %v455
      %v457 = vpop.f32.mrf.mxu0
      %v458 = vadd.f32 %v355, %v457
      %459 = vdwg.mxu0
      %v462 = vunpack.c.l.b16 %v376
      %v463 = vunpack.c.l.b16 %v377
      %v464 = vpack.c.b16 %v463, %v462
      %465 = vrot.lane.b32.xlu0 %v464, 96
      %v466 = vpop.permute.xlu0 %465
      %v468 = vsel %vm385, %v464, 0
      %v471 = vsel %vm385, %v466, 0
      %473 = vmatpush.bf16.xpose.msra.mxu0 0
      %474 = vmatpush.bf16.xpose.msra.mxu0 0
      %475 = vmatpush.bf16.xpose.msra.mxu0 0
      %476 = vmatpush.bf16.xpose.msra.mxu0 0
      %477 = vmatpush.bf16.xpose.msra.mxu0 0
      %478 = vmatpush.bf16.xpose.msra.mxu0 0
      %479 = vmatpush.bf16.xpose.msra.mxu0 0
      %480 = vmatpush.bf16.xpose.msra.mxu0 %v471
      %481 = vmatmul.bf16.gmra.mxu0 %v468
      %v482 = vpop.f32.mrf.mxu0
      %v483 = vadd.f32 %v354, %v482
      %v484 = vpop.f32.mrf.mxu0
      %v485 = vadd.f32 %v355, %v484
      %486 = vdwg.mxu0
      %v487 = vadd.f32 %v402, %v362
      %v488 = vadd.f32 %v404, %v363
      %v489 = vadd.f32 %v429, %v364
      %v490 = vadd.f32 %v431, %v365
      %v491 = vadd.f32 %v456, %v366
      %v492 = vadd.f32 %v458, %v367
      %v493 = vadd.f32 %v483, %v368
      %v494 = vadd.f32 %v485, %v369
      %vm495 = vcmask 130048
      %v496 = vsel %vm495, %v487, -inf
      %497 = vmax.xlane.f32.xlu0 %v496
      %v498 = vpop.xlane.xlu0 %497
      %v499 = vsel %vm495, %v488, -inf
      %500 = vmax.xlane.f32.xlu0 %v499
      %v501 = vpop.xlane.xlu0 %500
      %v502 = vsel %vm495, %v489, -inf
      %503 = vmax.xlane.f32.xlu0 %v502
      %v504 = vpop.xlane.xlu0 %503
      %v505 = vsel %vm495, %v490, -inf
      %506 = vmax.xlane.f32.xlu0 %v505
      %v507 = vpop.xlane.xlu0 %506
      %v508 = vsel %vm495, %v491, -inf
      %509 = vmax.xlane.f32.xlu0 %v508
      %v510 = vpop.xlane.xlu0 %509
      %v511 = vsel %vm495, %v492, -inf
      %512 = vmax.xlane.f32.xlu0 %v511
      %v513 = vpop.xlane.xlu0 %512
      %v514 = vsel %vm495, %v493, -inf
      %515 = vmax.xlane.f32.xlu0 %v514
      %v516 = vpop.xlane.xlu0 %515
      %v517 = vsel %vm495, %v494, -inf
      %518 = vmax.xlane.f32.xlu0 %v517
      %v519 = vpop.xlane.xlu0 %518
      %v520 = vsub.f32 %v487, %v498
      %v521 = vsub.f32 %v488, %v501
      %v522 = vsub.f32 %v489, %v504
      %v523 = vsub.f32 %v490, %v507
      %v524 = vsub.f32 %v491, %v510
      %v525 = vsub.f32 %v492, %v513
      %v526 = vsub.f32 %v493, %v516
      %v527 = vsub.f32 %v494, %v519
      %v528 = vmul.f32 %v520, 1.442695
      %v529 = vpow.pop %v528
      %v530 = vmul.f32 %v521, 1.442695
      %v531 = vpow.pop %v530
      %v532 = vmul.f32 %v522, 1.442695
      %v533 = vpow.pop %v532
      %v534 = vmul.f32 %v523, 1.442695
      %v535 = vpow.pop %v534
      %v536 = vmul.f32 %v524, 1.442695
      %v537 = vpow.pop %v536
      %v538 = vmul.f32 %v525, 1.442695
      %v539 = vpow.pop %v538
      %v540 = vmul.f32 %v526, 1.442695
      %v541 = vpow.pop %v540
      %v542 = vmul.f32 %v527, 1.442695
      %v543 = vpow.pop %v542
      %v544 = vsel %vm495, %v529, 0.0
      %545 = vadd.xlane.f32.xlu0 %v544
      %v546 = vpop.xlane.xlu0 %545
      %v547 = vsel %vm495, %v531, 0.0
      %548 = vadd.xlane.f32.xlu0 %v547
      %v549 = vpop.xlane.xlu0 %548
      %v550 = vsel %vm495, %v533, 0.0
      %551 = vadd.xlane.f32.xlu0 %v550
      %v552 = vpop.xlane.xlu0 %551
      %v553 = vsel %vm495, %v535, 0.0
      %554 = vadd.xlane.f32.xlu0 %v553
      %v555 = vpop.xlane.xlu0 %554
      %v556 = vsel %vm495, %v537, 0.0
      %557 = vadd.xlane.f32.xlu0 %v556
      %v558 = vpop.xlane.xlu0 %557
      %v559 = vsel %vm495, %v539, 0.0
      %560 = vadd.xlane.f32.xlu0 %v559
      %v561 = vpop.xlane.xlu0 %560
      %v562 = vsel %vm495, %v541, 0.0
      %563 = vadd.xlane.f32.xlu0 %v562
      %v564 = vpop.xlane.xlu0 %563
      %v565 = vsel %vm495, %v543, 0.0
      %566 = vadd.xlane.f32.xlu0 %v565
      %v567 = vpop.xlane.xlu0 %566
      %v568 = vrcp.pop %v546
      %v569 = vrcp.pop %v549
      %v570 = vrcp.pop %v552
      %v571 = vrcp.pop %v555
      %v572 = vrcp.pop %v558
      %v573 = vrcp.pop %v561
      %v574 = vrcp.pop %v564
      %v575 = vrcp.pop %v567
      %v576 = vmul.f32 %v529, %v568
      %v577 = vmul.f32 %v531, %v569
      %v578 = vmul.f32 %v533, %v570
      %v579 = vmul.f32 %v535, %v571
      %v580 = vmul.f32 %v537, %v572
      %v581 = vmul.f32 %v539, %v573
      %v582 = vmul.f32 %v541, %v574
      %v583 = vmul.f32 %v543, %v575
      %v584 = vpack.c.bf16 %v576, %v576
      %v585 = vpack.c.bf16 %v577, %v577
      %v586 = vpack.c.bf16 %v578, %v578
      %v587 = vpack.c.bf16 %v579, %v579
      %v588 = vpack.c.bf16 %v580, %v580
      %v589 = vpack.c.bf16 %v581, %v581
      %v590 = vpack.c.bf16 %v582, %v582
      %v591 = vpack.c.bf16 %v583, %v583
      %v594 = vunpack.c.l.b16 %v584
      %v595 = vunpack.c.l.b16 %v585
      %v596 = vpack.c.b16 %v595, %v594
      %597 = vrot.lane.b32.xlu0 %v382, 64
      %v598 = vpop.permute.xlu0 %597
      %v601 = vsel %vm495, %v596, 0
      %603 = vmatpush.bf16.msra.mxu0 0
      %604 = vmatpush.bf16.msra.mxu0 0
      %605 = vmatpush.bf16.msra.mxu0 0
      %606 = vmatpush.bf16.msra.mxu0 0
      %607 = vmatpush.bf16.msra.mxu0 0
      %608 = vmatpush.bf16.msra.mxu0 0
      %609 = vmatpush.bf16.msra.mxu0 0
      %610 = vmatpush.bf16.msra.mxu0 %v598
      %611 = vmatmul.bf16.gmra.mxu0 %v601
      %v612 = vpop.f32.mrf.mxu0
      %v613 = vadd.f32 0.0, %v612
      %v614 = vpop.f32.mrf.mxu0
      %v615 = vadd.f32 0.0, %v614
      %616 = vdwg.mxu0
      %v619 = vunpack.c.l.b16 %v586
      %v620 = vunpack.c.l.b16 %v587
      %v621 = vpack.c.b16 %v620, %v619
      %622 = vrot.lane.b32.xlu0 %v410, 64
      %v623 = vpop.permute.xlu0 %622
      %v626 = vsel %vm495, %v621, 0
      %628 = vmatpush.bf16.msra.mxu0 0
      %629 = vmatpush.bf16.msra.mxu0 0
      %630 = vmatpush.bf16.msra.mxu0 0
      %631 = vmatpush.bf16.msra.mxu0 0
      %632 = vmatpush.bf16.msra.mxu0 0
      %633 = vmatpush.bf16.msra.mxu0 0
      %634 = vmatpush.bf16.msra.mxu0 0
      %635 = vmatpush.bf16.msra.mxu0 %v623
      %636 = vmatmul.bf16.gmra.mxu0 %v626
      %v637 = vpop.f32.mrf.mxu0
      %v638 = vadd.f32 0.0, %v637
      %v639 = vpop.f32.mrf.mxu0
      %v640 = vadd.f32 0.0, %v639
      %641 = vdwg.mxu0
      %v644 = vunpack.c.l.b16 %v588
      %v645 = vunpack.c.l.b16 %v589
      %v646 = vpack.c.b16 %v645, %v644
      %647 = vrot.lane.b32.xlu0 %v437, 64
      %v648 = vpop.permute.xlu0 %647
      %v651 = vsel %vm495, %v646, 0
      %653 = vmatpush.bf16.msra.mxu0 0
      %654 = vmatpush.bf16.msra.mxu0 0
      %655 = vmatpush.bf16.msra.mxu0 0
      %656 = vmatpush.bf16.msra.mxu0 0
      %657 = vmatpush.bf16.msra.mxu0 0
      %658 = vmatpush.bf16.msra.mxu0 0
      %659 = vmatpush.bf16.msra.mxu0 0
      %660 = vmatpush.bf16.msra.mxu0 %v648
      %661 = vmatmul.bf16.gmra.mxu0 %v651
      %v662 = vpop.f32.mrf.mxu0
      %v663 = vadd.f32 0.0, %v662
      %v664 = vpop.f32.mrf.mxu0
      %v665 = vadd.f32 0.0, %v664
      %666 = vdwg.mxu0
      %v669 = vunpack.c.l.b16 %v590
      %v670 = vunpack.c.l.b16 %v591
      %v671 = vpack.c.b16 %v670, %v669
      %672 = vrot.lane.b32.xlu0 %v464, 64
      %v673 = vpop.permute.xlu0 %672
      %v676 = vsel %vm495, %v671, 0
      %678 = vmatpush.bf16.msra.mxu0 0
      %679 = vmatpush.bf16.msra.mxu0 0
      %680 = vmatpush.bf16.msra.mxu0 0
      %681 = vmatpush.bf16.msra.mxu0 0
      %682 = vmatpush.bf16.msra.mxu0 0
      %683 = vmatpush.bf16.msra.mxu0 0
      %684 = vmatpush.bf16.msra.mxu0 0
      %685 = vmatpush.bf16.msra.mxu0 %v673
      %686 = vmatmul.bf16.gmra.mxu0 %v676
      %v687 = vpop.f32.mrf.mxu0
      %v688 = vadd.f32 0.0, %v687
      %v689 = vpop.f32.mrf.mxu0
      %v690 = vadd.f32 0.0, %v689
      %691 = vdwg.mxu0
      %v692 = vpack.c.bf16 %v613, %v613
      %v693 = vpack.c.bf16 %v615, %v615
      %v694 = vpack.c.bf16 %v638, %v638
      %v695 = vpack.c.bf16 %v640, %v640
      %v696 = vpack.c.bf16 %v663, %v663
      %v697 = vpack.c.bf16 %v665, %v665
      %v698 = vpack.c.bf16 %v688, %v688
      %v699 = vpack.c.bf16 %v690, %v690
      %vm700 = vcmask 60416
      %701 = vst.msk [vmem:[#allocation2] sm:$0xf] %vm700, %v692
      %702 = vst.msk [vmem:[#allocation2 + $0x4] sm:$0xf] %vm700, %v693
      %703 = vst.msk [vmem:[#allocation2 + $0x8] sm:$0xf] %vm700, %v694
      %704 = vst.msk [vmem:[#allocation2 + $0xc] sm:$0xf] %vm700, %v695
      %705 = vst.msk [vmem:[#allocation2 + $0x10] sm:$0xf] %vm700, %v696
      %706 = vst.msk [vmem:[#allocation2 + $0x14] sm:$0xf] %vm700, %v697
      %707 = vst.msk [vmem:[#allocation2 + $0x18] sm:$0xf] %vm700, %v698
      %708 = vst.msk [vmem:[#allocation2 + $0x1c] sm:$0xf] %vm700, %v699
      %709 = vrot.lane.b32.xlu0 %v382, 120
      %v710 = vpop.permute.xlu0 %709
      %711 = vrot.lane.b32.xlu0 %v382, 88
      %v712 = vpop.permute.xlu0 %711
      %v714 = vsel %vm385, %v710, 0
      %v717 = vsel %vm385, %v712, 0
      %719 = vmatpush.bf16.xpose.msra.mxu0 0
      %720 = vmatpush.bf16.xpose.msra.mxu0 0
      %721 = vmatpush.bf16.xpose.msra.mxu0 0
      %722 = vmatpush.bf16.xpose.msra.mxu0 0
      %723 = vmatpush.bf16.xpose.msra.mxu0 0
      %724 = vmatpush.bf16.xpose.msra.mxu0 0
      %725 = vmatpush.bf16.xpose.msra.mxu0 0
      %726 = vmatpush.bf16.xpose.msra.mxu0 %v717
      %727 = vmatmul.bf16.gmra.mxu0 %v714
      %v728 = vpop.f32.mrf.mxu0
      %v729 = vadd.f32 %v356, %v728
      %v730 = vpop.f32.mrf.mxu0
      %v731 = vadd.f32 %v357, %v730
      %732 = vdwg.mxu0
      %733 = vrot.lane.b32.xlu0 %v410, 120
      %v734 = vpop.permute.xlu0 %733
      %735 = vrot.lane.b32.xlu0 %v410, 88
      %v736 = vpop.permute.xlu0 %735
      %v738 = vsel %vm385, %v734, 0
      %v741 = vsel %vm385, %v736, 0
      %743 = vmatpush.bf16.xpose.msra.mxu0 0
      %744 = vmatpush.bf16.xpose.msra.mxu0 0
      %745 = vmatpush.bf16.xpose.msra.mxu0 0
      %746 = vmatpush.bf16.xpose.msra.mxu0 0
      %747 = vmatpush.bf16.xpose.msra.mxu0 0
      %748 = vmatpush.bf16.xpose.msra.mxu0 0
      %749 = vmatpush.bf16.xpose.msra.mxu0 0
      %750 = vmatpush.bf16.xpose.msra.mxu0 %v741
      %751 = vmatmul.bf16.gmra.mxu0 %v738
      %v752 = vpop.f32.mrf.mxu0
      %v753 = vadd.f32 %v356, %v752
      %v754 = vpop.f32.mrf.mxu0
      %v755 = vadd.f32 %v357, %v754
      %756 = vdwg.mxu0
      %757 = vrot.lane.b32.xlu0 %v437, 120
      %v758 = vpop.permute.xlu0 %757
      %759 = vrot.lane.b32.xlu0 %v437, 88
      %v760 = vpop.permute.xlu0 %759
      %v762 = vsel %vm385, %v758, 0
      %v765 = vsel %vm385, %v760, 0
      %767 = vmatpush.bf16.xpose.msra.mxu0 0
      %768 = vmatpush.bf16.xpose.msra.mxu0 0
      %769 = vmatpush.bf16.xpose.msra.mxu0 0
      %770 = vmatpush.bf16.xpose.msra.mxu0 0
      %771 = vmatpush.bf16.xpose.msra.mxu0 0
      %772 = vmatpush.bf16.xpose.msra.mxu0 0
      %773 = vmatpush.bf16.xpose.msra.mxu0 0
      %774 = vmatpush.bf16.xpose.msra.mxu0 %v765
      %775 = vmatmul.bf16.gmra.mxu0 %v762
      %v776 = vpop.f32.mrf.mxu0
      %v777 = vadd.f32 %v356, %v776
      %v778 = vpop.f32.mrf.mxu0
      %v779 = vadd.f32 %v357, %v778
      %780 = vdwg.mxu0
      %781 = vrot.lane.b32.xlu0 %v464, 120
      %v782 = vpop.permute.xlu0 %781
      %783 = vrot.lane.b32.xlu0 %v464, 88
      %v784 = vpop.permute.xlu0 %783
      %v786 = vsel %vm385, %v782, 0
      %v789 = vsel %vm385, %v784, 0
      %791 = vmatpush.bf16.xpose.msra.mxu0 0
      %792 = vmatpush.bf16.xpose.msra.mxu0 0
      %793 = vmatpush.bf16.xpose.msra.mxu0 0
      %794 = vmatpush.bf16.xpose.msra.mxu0 0
      %795 = vmatpush.bf16.xpose.msra.mxu0 0
      %796 = vmatpush.bf16.xpose.msra.mxu0 0
      %797 = vmatpush.bf16.xpose.msra.mxu0 0
      %798 = vmatpush.bf16.xpose.msra.mxu0 %v789
      %799 = vmatmul.bf16.gmra.mxu0 %v786
      %v800 = vpop.f32.mrf.mxu0
      %v801 = vadd.f32 %v356, %v800
      %v802 = vpop.f32.mrf.mxu0
      %v803 = vadd.f32 %v357, %v802
      %804 = vdwg.mxu0
      %v805 = vadd.f32 %v729, %v362
      %v806 = vadd.f32 %v731, %v363
      %v807 = vadd.f32 %v753, %v364
      %v808 = vadd.f32 %v755, %v365
      %v809 = vadd.f32 %v777, %v366
      %v810 = vadd.f32 %v779, %v367
      %v811 = vadd.f32 %v801, %v368
      %v812 = vadd.f32 %v803, %v369
      %v813 = vsel %vm495, %v805, -inf
      %814 = vmax.xlane.f32.xlu0 %v813
      %v815 = vpop.xlane.xlu0 %814
      %v816 = vsel %vm495, %v806, -inf
      %817 = vmax.xlane.f32.xlu0 %v816
      %v818 = vpop.xlane.xlu0 %817
      %v819 = vsel %vm495, %v807, -inf
      %820 = vmax.xlane.f32.xlu0 %v819
      %v821 = vpop.xlane.xlu0 %820
      %v822 = vsel %vm495, %v808, -inf
      %823 = vmax.xlane.f32.xlu0 %v822
      %v824 = vpop.xlane.xlu0 %823
      %v825 = vsel %vm495, %v809, -inf
      %826 = vmax.xlane.f32.xlu0 %v825
      %v827 = vpop.xlane.xlu0 %826
      %v828 = vsel %vm495, %v810, -inf
      %829 = vmax.xlane.f32.xlu0 %v828
      %v830 = vpop.xlane.xlu0 %829
      %v831 = vsel %vm495, %v811, -inf
      %832 = vmax.xlane.f32.xlu0 %v831
      %v833 = vpop.xlane.xlu0 %832
      %v834 = vsel %vm495, %v812, -inf
      %835 = vmax.xlane.f32.xlu0 %v834
      %v836 = vpop.xlane.xlu0 %835
      %v837 = vsub.f32 %v805, %v815
      %v838 = vsub.f32 %v806, %v818
      %v839 = vsub.f32 %v807, %v821
      %v840 = vsub.f32 %v808, %v824
      %v841 = vsub.f32 %v809, %v827
      %v842 = vsub.f32 %v810, %v830
      %v843 = vsub.f32 %v811, %v833
      %v844 = vsub.f32 %v812, %v836
      %v845 = vmul.f32 %v837, 1.442695
      %v846 = vpow.pop %v845
      %v847 = vmul.f32 %v838, 1.442695
      %v848 = vpow.pop %v847
      %v849 = vmul.f32 %v839, 1.442695
      %v850 = vpow.pop %v849
      %v851 = vmul.f32 %v840, 1.442695
      %v852 = vpow.pop %v851
      %v853 = vmul.f32 %v841, 1.442695
      %v854 = vpow.pop %v853
      %v855 = vmul.f32 %v842, 1.442695
      %v856 = vpow.pop %v855
      %v857 = vmul.f32 %v843, 1.442695
      %v858 = vpow.pop %v857
      %v859 = vmul.f32 %v844, 1.442695
      %v860 = vpow.pop %v859
      %v861 = vsel %vm495, %v846, 0.0
      %862 = vadd.xlane.f32.xlu0 %v861
      %v863 = vpop.xlane.xlu0 %862
      %v864 = vsel %vm495, %v848, 0.0
      %865 = vadd.xlane.f32.xlu0 %v864
      %v866 = vpop.xlane.xlu0 %865
      %v867 = vsel %vm495, %v850, 0.0
      %868 = vadd.xlane.f32.xlu0 %v867
      %v869 = vpop.xlane.xlu0 %868
      %v870 = vsel %vm495, %v852, 0.0
      %871 = vadd.xlane.f32.xlu0 %v870
      %v872 = vpop.xlane.xlu0 %871
      %v873 = vsel %vm495, %v854, 0.0
      %874 = vadd.xlane.f32.xlu0 %v873
      %v875 = vpop.xlane.xlu0 %874
      %v876 = vsel %vm495, %v856, 0.0
      %877 = vadd.xlane.f32.xlu0 %v876
      %v878 = vpop.xlane.xlu0 %877
      %v879 = vsel %vm495, %v858, 0.0
      %880 = vadd.xlane.f32.xlu0 %v879
      %v881 = vpop.xlane.xlu0 %880
      %v882 = vsel %vm495, %v860, 0.0
      %883 = vadd.xlane.f32.xlu0 %v882
      %v884 = vpop.xlane.xlu0 %883
      %v885 = vrcp.pop %v863
      %v886 = vrcp.pop %v866
      %v887 = vrcp.pop %v869
      %v888 = vrcp.pop %v872
      %v889 = vrcp.pop %v875
      %v890 = vrcp.pop %v878
      %v891 = vrcp.pop %v881
      %v892 = vrcp.pop %v884
      %v893 = vmul.f32 %v846, %v885
      %v894 = vmul.f32 %v848, %v886
      %v895 = vmul.f32 %v850, %v887
      %v896 = vmul.f32 %v852, %v888
      %v897 = vmul.f32 %v854, %v889
      %v898 = vmul.f32 %v856, %v890
      %v899 = vmul.f32 %v858, %v891
      %v900 = vmul.f32 %v860, %v892
      %v901 = vpack.c.bf16 %v893, %v893
      %v902 = vpack.c.bf16 %v894, %v894
      %v903 = vpack.c.bf16 %v895, %v895
      %v904 = vpack.c.bf16 %v896, %v896
      %v905 = vpack.c.bf16 %v897, %v897
      %v906 = vpack.c.bf16 %v898, %v898
      %v907 = vpack.c.bf16 %v899, %v899
      %v908 = vpack.c.bf16 %v900, %v900
      %v911 = vunpack.c.l.b16 %v901
      %v912 = vunpack.c.l.b16 %v902
      %v913 = vpack.c.b16 %v912, %v911
      %914 = vrot.lane.b32.xlu0 %v382, 56
      %v915 = vpop.permute.xlu0 %914
      %v918 = vsel %vm495, %v913, 0
      %920 = vmatpush.bf16.msra.mxu0 0
      %921 = vmatpush.bf16.msra.mxu0 0
      %922 = vmatpush.bf16.msra.mxu0 0
      %923 = vmatpush.bf16.msra.mxu0 0
      %924 = vmatpush.bf16.msra.mxu0 0
      %925 = vmatpush.bf16.msra.mxu0 0
      %926 = vmatpush.bf16.msra.mxu0 0
      %927 = vmatpush.bf16.msra.mxu0 %v915
      %928 = vmatmul.bf16.gmra.mxu0 %v918
      %v929 = vpop.f32.mrf.mxu0
      %v930 = vadd.f32 0.0, %v929
      %v931 = vpop.f32.mrf.mxu0
      %v932 = vadd.f32 0.0, %v931
      %933 = vdwg.mxu0
      %v936 = vunpack.c.l.b16 %v903
      %v937 = vunpack.c.l.b16 %v904
      %v938 = vpack.c.b16 %v937, %v936
      %939 = vrot.lane.b32.xlu0 %v410, 56
      %v940 = vpop.permute.xlu0 %939
      %v943 = vsel %vm495, %v938, 0
      %945 = vmatpush.bf16.msra.mxu0 0
      %946 = vmatpush.bf16.msra.mxu0 0
      %947 = vmatpush.bf16.msra.mxu0 0
      %948 = vmatpush.bf16.msra.mxu0 0
      %949 = vmatpush.bf16.msra.mxu0 0
      %950 = vmatpush.bf16.msra.mxu0 0
      %951 = vmatpush.bf16.msra.mxu0 0
      %952 = vmatpush.bf16.msra.mxu0 %v940
      %953 = vmatmul.bf16.gmra.mxu0 %v943
      %v954 = vpop.f32.mrf.mxu0
      %v955 = vadd.f32 0.0, %v954
      %v956 = vpop.f32.mrf.mxu0
      %v957 = vadd.f32 0.0, %v956
      %958 = vdwg.mxu0
      %v961 = vunpack.c.l.b16 %v905
      %v962 = vunpack.c.l.b16 %v906
      %v963 = vpack.c.b16 %v962, %v961
      %964 = vrot.lane.b32.xlu0 %v437, 56
      %v965 = vpop.permute.xlu0 %964
      %v968 = vsel %vm495, %v963, 0
      %970 = vmatpush.bf16.msra.mxu0 0
      %971 = vmatpush.bf16.msra.mxu0 0
      %972 = vmatpush.bf16.msra.mxu0 0
      %973 = vmatpush.bf16.msra.mxu0 0
      %974 = vmatpush.bf16.msra.mxu0 0
      %975 = vmatpush.bf16.msra.mxu0 0
      %976 = vmatpush.bf16.msra.mxu0 0
      %977 = vmatpush.bf16.msra.mxu0 %v965
      %978 = vmatmul.bf16.gmra.mxu0 %v968
      %v979 = vpop.f32.mrf.mxu0
      %v980 = vadd.f32 0.0, %v979
      %v981 = vpop.f32.mrf.mxu0
      %v982 = vadd.f32 0.0, %v981
      %983 = vdwg.mxu0
      %v986 = vunpack.c.l.b16 %v907
      %v987 = vunpack.c.l.b16 %v908
      %v988 = vpack.c.b16 %v987, %v986
      %989 = vrot.lane.b32.xlu0 %v464, 56
      %v990 = vpop.permute.xlu0 %989
      %v993 = vsel %vm495, %v988, 0
      %995 = vmatpush.bf16.msra.mxu0 0
      %996 = vmatpush.bf16.msra.mxu0 0
      %997 = vmatpush.bf16.msra.mxu0 0
      %998 = vmatpush.bf16.msra.mxu0 0
      %999 = vmatpush.bf16.msra.mxu0 0
      %1000 = vmatpush.bf16.msra.mxu0 0
      %1001 = vmatpush.bf16.msra.mxu0 0
      %1002 = vmatpush.bf16.msra.mxu0 %v990
      %1003 = vmatmul.bf16.gmra.mxu0 %v993
      %v1004 = vpop.f32.mrf.mxu0
      %v1005 = vadd.f32 0.0, %v1004
      %v1006 = vpop.f32.mrf.mxu0
      %v1007 = vadd.f32 0.0, %v1006
      %1008 = vdwg.mxu0
      %v1009 = vpack.c.bf16 %v930, %v930
      %v1010 = vpack.c.bf16 %v932, %v932
      %v1011 = vpack.c.bf16 %v955, %v955
      %v1012 = vpack.c.bf16 %v957, %v957
      %v1013 = vpack.c.bf16 %v980, %v980
      %v1014 = vpack.c.bf16 %v982, %v982
      %v1015 = vpack.c.bf16 %v1005, %v1005
      %v1016 = vpack.c.bf16 %v1007, %v1007
      %1025 = vrot.lane.b32.xlu0 %v1009, 8
      %v1026 = vpop.permute.xlu0 %1025
      %1027 = vrot.lane.b32.xlu0 %v1010, 8
      %v1028 = vpop.permute.xlu0 %1027
      %1029 = vrot.lane.b32.xlu0 %v1011, 8
      %v1030 = vpop.permute.xlu0 %1029
      %1031 = vrot.lane.b32.xlu0 %v1012, 8
      %v1032 = vpop.permute.xlu0 %1031
      %1033 = vrot.lane.b32.xlu0 %v1013, 8
      %v1034 = vpop.permute.xlu0 %1033
      %1035 = vrot.lane.b32.xlu0 %v1014, 8
      %v1036 = vpop.permute.xlu0 %1035
      %1037 = vrot.lane.b32.xlu0 %v1015, 8
      %v1038 = vpop.permute.xlu0 %1037
      %1039 = vrot.lane.b32.xlu0 %v1016, 8
      %v1040 = vpop.permute.xlu0 %1039
      %vm1049 = vcmask 126016
      %1050 = vst.msk [vmem:[#allocation2] sm:$0xf] %vm1049, %v1026
      %1051 = vst.msk [vmem:[#allocation2 + $0x4] sm:$0xf] %vm1049, %v1028
      %1052 = vst.msk [vmem:[#allocation2 + $0x8] sm:$0xf] %vm1049, %v1030
      %1053 = vst.msk [vmem:[#allocation2 + $0xc] sm:$0xf] %vm1049, %v1032
      %1054 = vst.msk [vmem:[#allocation2 + $0x10] sm:$0xf] %vm1049, %v1034
      %1055 = vst.msk [vmem:[#allocation2 + $0x14] sm:$0xf] %vm1049, %v1036
      %1056 = vst.msk [vmem:[#allocation2 + $0x18] sm:$0xf] %vm1049, %v1038
      %1057 = vst.msk [vmem:[#allocation2 + $0x1c] sm:$0xf] %vm1049, %v1040
      %1058 = vrot.lane.b32.xlu0 %v382, 112
      %v1059 = vpop.permute.xlu0 %1058
      %1060 = vrot.lane.b32.xlu0 %v382, 80
      %v1061 = vpop.permute.xlu0 %1060
      %v1063 = vsel %vm385, %v1059, 0
      %v1066 = vsel %vm385, %v1061, 0
      %1068 = vmatpush.bf16.xpose.msra.mxu0 0
      %1069 = vmatpush.bf16.xpose.msra.mxu0 0
      %1070 = vmatpush.bf16.xpose.msra.mxu0 0
      %1071 = vmatpush.bf16.xpose.msra.mxu0 0
      %1072 = vmatpush.bf16.xpose.msra.mxu0 0
      %1073 = vmatpush.bf16.xpose.msra.mxu0 0
      %1074 = vmatpush.bf16.xpose.msra.mxu0 0
      %1075 = vmatpush.bf16.xpose.msra.mxu0 %v1066
      %1076 = vmatmul.bf16.gmra.mxu0 %v1063
      %v1077 = vpop.f32.mrf.mxu0
      %v1078 = vadd.f32 %v358, %v1077
      %v1079 = vpop.f32.mrf.mxu0
      %v1080 = vadd.f32 %v359, %v1079
      %1081 = vdwg.mxu0
      %1082 = vrot.lane.b32.xlu0 %v410, 112
      %v1083 = vpop.permute.xlu0 %1082
      %1084 = vrot.lane.b32.xlu0 %v410, 80
      %v1085 = vpop.permute.xlu0 %1084
      %v1087 = vsel %vm385, %v1083, 0
      %v1090 = vsel %vm385, %v1085, 0
      %1092 = vmatpush.bf16.xpose.msra.mxu0 0
      %1093 = vmatpush.bf16.xpose.msra.mxu0 0
      %1094 = vmatpush.bf16.xpose.msra.mxu0 0
      %1095 = vmatpush.bf16.xpose.msra.mxu0 0
      %1096 = vmatpush.bf16.xpose.msra.mxu0 0
      %1097 = vmatpush.bf16.xpose.msra.mxu0 0
      %1098 = vmatpush.bf16.xpose.msra.mxu0 0
      %1099 = vmatpush.bf16.xpose.msra.mxu0 %v1090
      %1100 = vmatmul.bf16.gmra.mxu0 %v1087
      %v1101 = vpop.f32.mrf.mxu0
      %v1102 = vadd.f32 %v358, %v1101
      %v1103 = vpop.f32.mrf.mxu0
      %v1104 = vadd.f32 %v359, %v1103
      %1105 = vdwg.mxu0
      %1106 = vrot.lane.b32.xlu0 %v437, 112
      %v1107 = vpop.permute.xlu0 %1106
      %1108 = vrot.lane.b32.xlu0 %v437, 80
      %v1109 = vpop.permute.xlu0 %1108
      %v1111 = vsel %vm385, %v1107, 0
      %v1114 = vsel %vm385, %v1109, 0
      %1116 = vmatpush.bf16.xpose.msra.mxu0 0
      %1117 = vmatpush.bf16.xpose.msra.mxu0 0
      %1118 = vmatpush.bf16.xpose.msra.mxu0 0
      %1119 = vmatpush.bf16.xpose.msra.mxu0 0
      %1120 = vmatpush.bf16.xpose.msra.mxu0 0
      %1121 = vmatpush.bf16.xpose.msra.mxu0 0
      %1122 = vmatpush.bf16.xpose.msra.mxu0 0
      %1123 = vmatpush.bf16.xpose.msra.mxu0 %v1114
      %1124 = vmatmul.bf16.gmra.mxu0 %v1111
      %v1125 = vpop.f32.mrf.mxu0
      %v1126 = vadd.f32 %v358, %v1125
      %v1127 = vpop.f32.mrf.mxu0
      %v1128 = vadd.f32 %v359, %v1127
      %1129 = vdwg.mxu0
      %1130 = vrot.lane.b32.xlu0 %v464, 112
      %v1131 = vpop.permute.xlu0 %1130
      %1132 = vrot.lane.b32.xlu0 %v464, 80
      %v1133 = vpop.permute.xlu0 %1132
      %v1135 = vsel %vm385, %v1131, 0
      %v1138 = vsel %vm385, %v1133, 0
      %1140 = vmatpush.bf16.xpose.msra.mxu0 0
      %1141 = vmatpush.bf16.xpose.msra.mxu0 0
      %1142 = vmatpush.bf16.xpose.msra.mxu0 0
      %1143 = vmatpush.bf16.xpose.msra.mxu0 0
      %1144 = vmatpush.bf16.xpose.msra.mxu0 0
      %1145 = vmatpush.bf16.xpose.msra.mxu0 0
      %1146 = vmatpush.bf16.xpose.msra.mxu0 0
      %1147 = vmatpush.bf16.xpose.msra.mxu0 %v1138
      %1148 = vmatmul.bf16.gmra.mxu0 %v1135
      %v1149 = vpop.f32.mrf.mxu0
      %v1150 = vadd.f32 %v358, %v1149
      %v1151 = vpop.f32.mrf.mxu0
      %v1152 = vadd.f32 %v359, %v1151
      %1153 = vdwg.mxu0
      %v1154 = vadd.f32 %v1078, %v362
      %v1155 = vadd.f32 %v1080, %v363
      %v1156 = vadd.f32 %v1102, %v364
      %v1157 = vadd.f32 %v1104, %v365
      %v1158 = vadd.f32 %v1126, %v366
      %v1159 = vadd.f32 %v1128, %v367
      %v1160 = vadd.f32 %v1150, %v368
      %v1161 = vadd.f32 %v1152, %v369
      %v1162 = vsel %vm495, %v1154, -inf
      %1163 = vmax.xlane.f32.xlu0 %v1162
      %v1164 = vpop.xlane.xlu0 %1163
      %v1165 = vsel %vm495, %v1155, -inf
      %1166 = vmax.xlane.f32.xlu0 %v1165
      %v1167 = vpop.xlane.xlu0 %1166
      %v1168 = vsel %vm495, %v1156, -inf
      %1169 = vmax.xlane.f32.xlu0 %v1168
      %v1170 = vpop.xlane.xlu0 %1169
      %v1171 = vsel %vm495, %v1157, -inf
      %1172 = vmax.xlane.f32.xlu0 %v1171
      %v1173 = vpop.xlane.xlu0 %1172
      %v1174 = vsel %vm495, %v1158, -inf
      %1175 = vmax.xlane.f32.xlu0 %v1174
      %v1176 = vpop.xlane.xlu0 %1175
      %v1177 = vsel %vm495, %v1159, -inf
      %1178 = vmax.xlane.f32.xlu0 %v1177
      %v1179 = vpop.xlane.xlu0 %1178
      %v1180 = vsel %vm495, %v1160, -inf
      %1181 = vmax.xlane.f32.xlu0 %v1180
      %v1182 = vpop.xlane.xlu0 %1181
      %v1183 = vsel %vm495, %v1161, -inf
      %1184 = vmax.xlane.f32.xlu0 %v1183
      %v1185 = vpop.xlane.xlu0 %1184
      %v1186 = vsub.f32 %v1154, %v1164
      %v1187 = vsub.f32 %v1155, %v1167
      %v1188 = vsub.f32 %v1156, %v1170
      %v1189 = vsub.f32 %v1157, %v1173
      %v1190 = vsub.f32 %v1158, %v1176
      %v1191 = vsub.f32 %v1159, %v1179
      %v1192 = vsub.f32 %v1160, %v1182
      %v1193 = vsub.f32 %v1161, %v1185
      %v1194 = vmul.f32 %v1186, 1.442695
      %v1195 = vpow.pop %v1194
      %v1196 = vmul.f32 %v1187, 1.442695
      %v1197 = vpow.pop %v1196
      %v1198 = vmul.f32 %v1188, 1.442695
      %v1199 = vpow.pop %v1198
      %v1200 = vmul.f32 %v1189, 1.442695
      %v1201 = vpow.pop %v1200
      %v1202 = vmul.f32 %v1190, 1.442695
      %v1203 = vpow.pop %v1202
      %v1204 = vmul.f32 %v1191, 1.442695
      %v1205 = vpow.pop %v1204
      %v1206 = vmul.f32 %v1192, 1.442695
      %v1207 = vpow.pop %v1206
      %v1208 = vmul.f32 %v1193, 1.442695
      %v1209 = vpow.pop %v1208
      %v1210 = vsel %vm495, %v1195, 0.0
      %1211 = vadd.xlane.f32.xlu0 %v1210
      %v1212 = vpop.xlane.xlu0 %1211
      %v1213 = vsel %vm495, %v1197, 0.0
      %1214 = vadd.xlane.f32.xlu0 %v1213
      %v1215 = vpop.xlane.xlu0 %1214
      %v1216 = vsel %vm495, %v1199, 0.0
      %1217 = vadd.xlane.f32.xlu0 %v1216
      %v1218 = vpop.xlane.xlu0 %1217
      %v1219 = vsel %vm495, %v1201, 0.0
      %1220 = vadd.xlane.f32.xlu0 %v1219
      %v1221 = vpop.xlane.xlu0 %1220
      %v1222 = vsel %vm495, %v1203, 0.0
      %1223 = vadd.xlane.f32.xlu0 %v1222
      %v1224 = vpop.xlane.xlu0 %1223
      %v1225 = vsel %vm495, %v1205, 0.0
      %1226 = vadd.xlane.f32.xlu0 %v1225
      %v1227 = vpop.xlane.xlu0 %1226
      %v1228 = vsel %vm495, %v1207, 0.0
      %1229 = vadd.xlane.f32.xlu0 %v1228
      %v1230 = vpop.xlane.xlu0 %1229
      %v1231 = vsel %vm495, %v1209, 0.0
      %1232 = vadd.xlane.f32.xlu0 %v1231
      %v1233 = vpop.xlane.xlu0 %1232
      %v1234 = vrcp.pop %v1212
      %v1235 = vrcp.pop %v1215
      %v1236 = vrcp.pop %v1218
      %v1237 = vrcp.pop %v1221
      %v1238 = vrcp.pop %v1224
      %v1239 = vrcp.pop %v1227
      %v1240 = vrcp.pop %v1230
      %v1241 = vrcp.pop %v1233
      %v1242 = vmul.f32 %v1195, %v1234
      %v1243 = vmul.f32 %v1197, %v1235
      %v1244 = vmul.f32 %v1199, %v1236
      %v1245 = vmul.f32 %v1201, %v1237
      %v1246 = vmul.f32 %v1203, %v1238
      %v1247 = vmul.f32 %v1205, %v1239
      %v1248 = vmul.f32 %v1207, %v1240
      %v1249 = vmul.f32 %v1209, %v1241
      %v1250 = vpack.c.bf16 %v1242, %v1242
      %v1251 = vpack.c.bf16 %v1243, %v1243
      %v1252 = vpack.c.bf16 %v1244, %v1244
      %v1253 = vpack.c.bf16 %v1245, %v1245
      %v1254 = vpack.c.bf16 %v1246, %v1246
      %v1255 = vpack.c.bf16 %v1247, %v1247
      %v1256 = vpack.c.bf16 %v1248, %v1248
      %v1257 = vpack.c.bf16 %v1249, %v1249
      %v1260 = vunpack.c.l.b16 %v1250
      %v1261 = vunpack.c.l.b16 %v1251
      %v1262 = vpack.c.b16 %v1261, %v1260
      %1263 = vrot.lane.b32.xlu0 %v382, 48
      %v1264 = vpop.permute.xlu0 %1263
      %v1267 = vsel %vm495, %v1262, 0
      %1269 = vmatpush.bf16.msra.mxu0 0
      %1270 = vmatpush.bf16.msra.mxu0 0
      %1271 = vmatpush.bf16.msra.mxu0 0
      %1272 = vmatpush.bf16.msra.mxu0 0
      %1273 = vmatpush.bf16.msra.mxu0 0
      %1274 = vmatpush.bf16.msra.mxu0 0
      %1275 = vmatpush.bf16.msra.mxu0 0
      %1276 = vmatpush.bf16.msra.mxu0 %v1264
      %1277 = vmatmul.bf16.gmra.mxu0 %v1267
      %v1278 = vpop.f32.mrf.mxu0
      %v1279 = vadd.f32 0.0, %v1278
      %v1280 = vpop.f32.mrf.mxu0
      %v1281 = vadd.f32 0.0, %v1280
      %1282 = vdwg.mxu0
      %v1285 = vunpack.c.l.b16 %v1252
      %v1286 = vunpack.c.l.b16 %v1253
      %v1287 = vpack.c.b16 %v1286, %v1285
      %1288 = vrot.lane.b32.xlu0 %v410, 48
      %v1289 = vpop.permute.xlu0 %1288
      %v1292 = vsel %vm495, %v1287, 0
      %1294 = vmatpush.bf16.msra.mxu0 0
      %1295 = vmatpush.bf16.msra.mxu0 0
      %1296 = vmatpush.bf16.msra.mxu0 0
      %1297 = vmatpush.bf16.msra.mxu0 0
      %1298 = vmatpush.bf16.msra.mxu0 0
      %1299 = vmatpush.bf16.msra.mxu0 0
      %1300 = vmatpush.bf16.msra.mxu0 0
      %1301 = vmatpush.bf16.msra.mxu0 %v1289
      %1302 = vmatmul.bf16.gmra.mxu0 %v1292
      %v1303 = vpop.f32.mrf.mxu0
      %v1304 = vadd.f32 0.0, %v1303
      %v1305 = vpop.f32.mrf.mxu0
      %v1306 = vadd.f32 0.0, %v1305
      %1307 = vdwg.mxu0
      %v1310 = vunpack.c.l.b16 %v1254
      %v1311 = vunpack.c.l.b16 %v1255
      %v1312 = vpack.c.b16 %v1311, %v1310
      %1313 = vrot.lane.b32.xlu0 %v437, 48
      %v1314 = vpop.permute.xlu0 %1313
      %v1317 = vsel %vm495, %v1312, 0
      %1319 = vmatpush.bf16.msra.mxu0 0
      %1320 = vmatpush.bf16.msra.mxu0 0
      %1321 = vmatpush.bf16.msra.mxu0 0
      %1322 = vmatpush.bf16.msra.mxu0 0
      %1323 = vmatpush.bf16.msra.mxu0 0
      %1324 = vmatpush.bf16.msra.mxu0 0
      %1325 = vmatpush.bf16.msra.mxu0 0
      %1326 = vmatpush.bf16.msra.mxu0 %v1314
      %1327 = vmatmul.bf16.gmra.mxu0 %v1317
      %v1328 = vpop.f32.mrf.mxu0
      %v1329 = vadd.f32 0.0, %v1328
      %v1330 = vpop.f32.mrf.mxu0
      %v1331 = vadd.f32 0.0, %v1330
      %1332 = vdwg.mxu0
      %v1335 = vunpack.c.l.b16 %v1256
      %v1336 = vunpack.c.l.b16 %v1257
      %v1337 = vpack.c.b16 %v1336, %v1335
      %1338 = vrot.lane.b32.xlu0 %v464, 48
      %v1339 = vpop.permute.xlu0 %1338
      %v1342 = vsel %vm495, %v1337, 0
      %1344 = vmatpush.bf16.msra.mxu0 0
      %1345 = vmatpush.bf16.msra.mxu0 0
      %1346 = vmatpush.bf16.msra.mxu0 0
      %1347 = vmatpush.bf16.msra.mxu0 0
      %1348 = vmatpush.bf16.msra.mxu0 0
      %1349 = vmatpush.bf16.msra.mxu0 0
      %1350 = vmatpush.bf16.msra.mxu0 0
      %1351 = vmatpush.bf16.msra.mxu0 %v1339
      %1352 = vmatmul.bf16.gmra.mxu0 %v1342
      %v1353 = vpop.f32.mrf.mxu0
      %v1354 = vadd.f32 0.0, %v1353
      %v1355 = vpop.f32.mrf.mxu0
      %v1356 = vadd.f32 0.0, %v1355
      %1357 = vdwg.mxu0
      %v1358 = vpack.c.bf16 %v1279, %v1279
      %v1359 = vpack.c.bf16 %v1281, %v1281
      %v1360 = vpack.c.bf16 %v1304, %v1304
      %v1361 = vpack.c.bf16 %v1306, %v1306
      %v1362 = vpack.c.bf16 %v1329, %v1329
      %v1363 = vpack.c.bf16 %v1331, %v1331
      %v1364 = vpack.c.bf16 %v1354, %v1354
      %v1365 = vpack.c.bf16 %v1356, %v1356
      %1374 = vrot.lane.b32.xlu0 %v1358, 16
      %v1375 = vpop.permute.xlu0 %1374
      %1376 = vrot.lane.b32.xlu0 %v1359, 16
      %v1377 = vpop.permute.xlu0 %1376
      %1378 = vrot.lane.b32.xlu0 %v1360, 16
      %v1379 = vpop.permute.xlu0 %1378
      %1380 = vrot.lane.b32.xlu0 %v1361, 16
      %v1381 = vpop.permute.xlu0 %1380
      %1382 = vrot.lane.b32.xlu0 %v1362, 16
      %v1383 = vpop.permute.xlu0 %1382
      %1384 = vrot.lane.b32.xlu0 %v1363, 16
      %v1385 = vpop.permute.xlu0 %1384
      %1386 = vrot.lane.b32.xlu0 %v1364, 16
      %v1387 = vpop.permute.xlu0 %1386
      %1388 = vrot.lane.b32.xlu0 %v1365, 16
      %v1389 = vpop.permute.xlu0 %1388
      %vm1398 = vcmask 191616
      %1399 = vst.msk [vmem:[#allocation2] sm:$0xf] %vm1398, %v1375
      %1400 = vst.msk [vmem:[#allocation2 + $0x4] sm:$0xf] %vm1398, %v1377
      %1401 = vst.msk [vmem:[#allocation2 + $0x8] sm:$0xf] %vm1398, %v1379
      %1402 = vst.msk [vmem:[#allocation2 + $0xc] sm:$0xf] %vm1398, %v1381
      %1403 = vst.msk [vmem:[#allocation2 + $0x10] sm:$0xf] %vm1398, %v1383
      %1404 = vst.msk [vmem:[#allocation2 + $0x14] sm:$0xf] %vm1398, %v1385
      %1405 = vst.msk [vmem:[#allocation2 + $0x18] sm:$0xf] %vm1398, %v1387
      %1406 = vst.msk [vmem:[#allocation2 + $0x1c] sm:$0xf] %vm1398, %v1389
      %1407 = vrot.lane.b32.xlu0 %v382, 104
      %v1408 = vpop.permute.xlu0 %1407
      %1409 = vrot.lane.b32.xlu0 %v382, 72
      %v1410 = vpop.permute.xlu0 %1409
      %v1412 = vsel %vm385, %v1408, 0
      %v1415 = vsel %vm385, %v1410, 0
      %1417 = vmatpush.bf16.xpose.msra.mxu0 0
      %1418 = vmatpush.bf16.xpose.msra.mxu0 0
      %1419 = vmatpush.bf16.xpose.msra.mxu0 0
      %1420 = vmatpush.bf16.xpose.msra.mxu0 0
      %1421 = vmatpush.bf16.xpose.msra.mxu0 0
      %1422 = vmatpush.bf16.xpose.msra.mxu0 0
      %1423 = vmatpush.bf16.xpose.msra.mxu0 0
      %1424 = vmatpush.bf16.xpose.msra.mxu0 %v1415
      %1425 = vmatmul.bf16.gmra.mxu0 %v1412
      %v1426 = vpop.f32.mrf.mxu0
      %v1427 = vadd.f32 %v360, %v1426
      %v1428 = vpop.f32.mrf.mxu0
      %v1429 = vadd.f32 %v361, %v1428
      %1430 = vdwg.mxu0
      %1431 = vrot.lane.b32.xlu0 %v410, 104
      %v1432 = vpop.permute.xlu0 %1431
      %1433 = vrot.lane.b32.xlu0 %v410, 72
      %v1434 = vpop.permute.xlu0 %1433
      %v1436 = vsel %vm385, %v1432, 0
      %v1439 = vsel %vm385, %v1434, 0
      %1441 = vmatpush.bf16.xpose.msra.mxu0 0
      %1442 = vmatpush.bf16.xpose.msra.mxu0 0
      %1443 = vmatpush.bf16.xpose.msra.mxu0 0
      %1444 = vmatpush.bf16.xpose.msra.mxu0 0
      %1445 = vmatpush.bf16.xpose.msra.mxu0 0
      %1446 = vmatpush.bf16.xpose.msra.mxu0 0
      %1447 = vmatpush.bf16.xpose.msra.mxu0 0
      %1448 = vmatpush.bf16.xpose.msra.mxu0 %v1439
      %1449 = vmatmul.bf16.gmra.mxu0 %v1436
      %v1450 = vpop.f32.mrf.mxu0
      %v1451 = vadd.f32 %v360, %v1450
      %v1452 = vpop.f32.mrf.mxu0
      %v1453 = vadd.f32 %v361, %v1452
      %1454 = vdwg.mxu0
      %1455 = vrot.lane.b32.xlu0 %v437, 104
      %v1456 = vpop.permute.xlu0 %1455
      %1457 = vrot.lane.b32.xlu0 %v437, 72
      %v1458 = vpop.permute.xlu0 %1457
      %v1460 = vsel %vm385, %v1456, 0
      %v1463 = vsel %vm385, %v1458, 0
      %1465 = vmatpush.bf16.xpose.msra.mxu0 0
      %1466 = vmatpush.bf16.xpose.msra.mxu0 0
      %1467 = vmatpush.bf16.xpose.msra.mxu0 0
      %1468 = vmatpush.bf16.xpose.msra.mxu0 0
      %1469 = vmatpush.bf16.xpose.msra.mxu0 0
      %1470 = vmatpush.bf16.xpose.msra.mxu0 0
      %1471 = vmatpush.bf16.xpose.msra.mxu0 0
      %1472 = vmatpush.bf16.xpose.msra.mxu0 %v1463
      %1473 = vmatmul.bf16.gmra.mxu0 %v1460
      %v1474 = vpop.f32.mrf.mxu0
      %v1475 = vadd.f32 %v360, %v1474
      %v1476 = vpop.f32.mrf.mxu0
      %v1477 = vadd.f32 %v361, %v1476
      %1478 = vdwg.mxu0
      %1479 = vrot.lane.b32.xlu0 %v464, 104
      %v1480 = vpop.permute.xlu0 %1479
      %1481 = vrot.lane.b32.xlu0 %v464, 72
      %v1482 = vpop.permute.xlu0 %1481
      %v1484 = vsel %vm385, %v1480, 0
      %v1487 = vsel %vm385, %v1482, 0
      %1489 = vmatpush.bf16.xpose.msra.mxu0 0
      %1490 = vmatpush.bf16.xpose.msra.mxu0 0
      %1491 = vmatpush.bf16.xpose.msra.mxu0 0
      %1492 = vmatpush.bf16.xpose.msra.mxu0 0
      %1493 = vmatpush.bf16.xpose.msra.mxu0 0
      %1494 = vmatpush.bf16.xpose.msra.mxu0 0
      %1495 = vmatpush.bf16.xpose.msra.mxu0 0
      %1496 = vmatpush.bf16.xpose.msra.mxu0 %v1487
      %1497 = vmatmul.bf16.gmra.mxu0 %v1484
      %v1498 = vpop.f32.mrf.mxu0
      %v1499 = vadd.f32 %v360, %v1498
      %v1500 = vpop.f32.mrf.mxu0
      %v1501 = vadd.f32 %v361, %v1500
      %1502 = vdwg.mxu0
      %v1503 = vadd.f32 %v1427, %v362
      %v1504 = vadd.f32 %v1429, %v363
      %v1505 = vadd.f32 %v1451, %v364
      %v1506 = vadd.f32 %v1453, %v365
      %v1507 = vadd.f32 %v1475, %v366
      %v1508 = vadd.f32 %v1477, %v367
      %v1509 = vadd.f32 %v1499, %v368
      %v1510 = vadd.f32 %v1501, %v369
      %v1511 = vsel %vm495, %v1503, -inf
      %1512 = vmax.xlane.f32.xlu0 %v1511
      %v1513 = vpop.xlane.xlu0 %1512
      %v1514 = vsel %vm495, %v1504, -inf
      %1515 = vmax.xlane.f32.xlu0 %v1514
      %v1516 = vpop.xlane.xlu0 %1515
      %v1517 = vsel %vm495, %v1505, -inf
      %1518 = vmax.xlane.f32.xlu0 %v1517
      %v1519 = vpop.xlane.xlu0 %1518
      %v1520 = vsel %vm495, %v1506, -inf
      %1521 = vmax.xlane.f32.xlu0 %v1520
      %v1522 = vpop.xlane.xlu0 %1521
      %v1523 = vsel %vm495, %v1507, -inf
      %1524 = vmax.xlane.f32.xlu0 %v1523
      %v1525 = vpop.xlane.xlu0 %1524
      %v1526 = vsel %vm495, %v1508, -inf
      %1527 = vmax.xlane.f32.xlu0 %v1526
      %v1528 = vpop.xlane.xlu0 %1527
      %v1529 = vsel %vm495, %v1509, -inf
      %1530 = vmax.xlane.f32.xlu0 %v1529
      %v1531 = vpop.xlane.xlu0 %1530
      %v1532 = vsel %vm495, %v1510, -inf
      %1533 = vmax.xlane.f32.xlu0 %v1532
      %v1534 = vpop.xlane.xlu0 %1533
      %v1535 = vsub.f32 %v1503, %v1513
      %v1536 = vsub.f32 %v1504, %v1516
      %v1537 = vsub.f32 %v1505, %v1519
      %v1538 = vsub.f32 %v1506, %v1522
      %v1539 = vsub.f32 %v1507, %v1525
      %v1540 = vsub.f32 %v1508, %v1528
      %v1541 = vsub.f32 %v1509, %v1531
      %v1542 = vsub.f32 %v1510, %v1534
      %v1543 = vmul.f32 %v1535, 1.442695
      %v1544 = vpow.pop %v1543
      %v1545 = vmul.f32 %v1536, 1.442695
      %v1546 = vpow.pop %v1545
      %v1547 = vmul.f32 %v1537, 1.442695
      %v1548 = vpow.pop %v1547
      %v1549 = vmul.f32 %v1538, 1.442695
      %v1550 = vpow.pop %v1549
      %v1551 = vmul.f32 %v1539, 1.442695
      %v1552 = vpow.pop %v1551
      %v1553 = vmul.f32 %v1540, 1.442695
      %v1554 = vpow.pop %v1553
      %v1555 = vmul.f32 %v1541, 1.442695
      %v1556 = vpow.pop %v1555
      %v1557 = vmul.f32 %v1542, 1.442695
      %v1558 = vpow.pop %v1557
      %v1559 = vsel %vm495, %v1544, 0.0
      %1560 = vadd.xlane.f32.xlu0 %v1559
      %v1561 = vpop.xlane.xlu0 %1560
      %v1562 = vsel %vm495, %v1546, 0.0
      %1563 = vadd.xlane.f32.xlu0 %v1562
      %v1564 = vpop.xlane.xlu0 %1563
      %v1565 = vsel %vm495, %v1548, 0.0
      %1566 = vadd.xlane.f32.xlu0 %v1565
      %v1567 = vpop.xlane.xlu0 %1566
      %v1568 = vsel %vm495, %v1550, 0.0
      %1569 = vadd.xlane.f32.xlu0 %v1568
      %v1570 = vpop.xlane.xlu0 %1569
      %v1571 = vsel %vm495, %v1552, 0.0
      %1572 = vadd.xlane.f32.xlu0 %v1571
      %v1573 = vpop.xlane.xlu0 %1572
      %v1574 = vsel %vm495, %v1554, 0.0
      %1575 = vadd.xlane.f32.xlu0 %v1574
      %v1576 = vpop.xlane.xlu0 %1575
      %v1577 = vsel %vm495, %v1556, 0.0
      %1578 = vadd.xlane.f32.xlu0 %v1577
      %v1579 = vpop.xlane.xlu0 %1578
      %v1580 = vsel %vm495, %v1558, 0.0
      %1581 = vadd.xlane.f32.xlu0 %v1580
      %v1582 = vpop.xlane.xlu0 %1581
      %v1583 = vrcp.pop %v1561
      %v1584 = vrcp.pop %v1564
      %v1585 = vrcp.pop %v1567
      %v1586 = vrcp.pop %v1570
      %v1587 = vrcp.pop %v1573
      %v1588 = vrcp.pop %v1576
      %v1589 = vrcp.pop %v1579
      %v1590 = vrcp.pop %v1582
      %v1591 = vmul.f32 %v1544, %v1583
      %v1592 = vmul.f32 %v1546, %v1584
      %v1593 = vmul.f32 %v1548, %v1585
      %v1594 = vmul.f32 %v1550, %v1586
      %v1595 = vmul.f32 %v1552, %v1587
      %v1596 = vmul.f32 %v1554, %v1588
      %v1597 = vmul.f32 %v1556, %v1589
      %v1598 = vmul.f32 %v1558, %v1590
      %v1599 = vpack.c.bf16 %v1591, %v1591
      %v1600 = vpack.c.bf16 %v1592, %v1592
      %v1601 = vpack.c.bf16 %v1593, %v1593
      %v1602 = vpack.c.bf16 %v1594, %v1594
      %v1603 = vpack.c.bf16 %v1595, %v1595
      %v1604 = vpack.c.bf16 %v1596, %v1596
      %v1605 = vpack.c.bf16 %v1597, %v1597
      %v1606 = vpack.c.bf16 %v1598, %v1598
      %v1609 = vunpack.c.l.b16 %v1599
      %v1610 = vunpack.c.l.b16 %v1600
      %v1611 = vpack.c.b16 %v1610, %v1609
      %1612 = vrot.lane.b32.xlu0 %v382, 40
      %v1613 = vpop.permute.xlu0 %1612
      %v1616 = vsel %vm495, %v1611, 0
      %1618 = vmatpush.bf16.msra.mxu0 0
      %1619 = vmatpush.bf16.msra.mxu0 0
      %1620 = vmatpush.bf16.msra.mxu0 0
      %1621 = vmatpush.bf16.msra.mxu0 0
      %1622 = vmatpush.bf16.msra.mxu0 0
      %1623 = vmatpush.bf16.msra.mxu0 0
      %1624 = vmatpush.bf16.msra.mxu0 0
      %1625 = vmatpush.bf16.msra.mxu0 %v1613
      %1626 = vmatmul.bf16.gmra.mxu0 %v1616
      %v1627 = vpop.f32.mrf.mxu0
      %v1628 = vadd.f32 0.0, %v1627
      %v1629 = vpop.f32.mrf.mxu0
      %v1630 = vadd.f32 0.0, %v1629
      %1631 = vdwg.mxu0
      %v1634 = vunpack.c.l.b16 %v1601
      %v1635 = vunpack.c.l.b16 %v1602
      %v1636 = vpack.c.b16 %v1635, %v1634
      %1637 = vrot.lane.b32.xlu0 %v410, 40
      %v1638 = vpop.permute.xlu0 %1637
      %v1641 = vsel %vm495, %v1636, 0
      %1643 = vmatpush.bf16.msra.mxu0 0
      %1644 = vmatpush.bf16.msra.mxu0 0
      %1645 = vmatpush.bf16.msra.mxu0 0
      %1646 = vmatpush.bf16.msra.mxu0 0
      %1647 = vmatpush.bf16.msra.mxu0 0
      %1648 = vmatpush.bf16.msra.mxu0 0
      %1649 = vmatpush.bf16.msra.mxu0 0
      %1650 = vmatpush.bf16.msra.mxu0 %v1638
      %1651 = vmatmul.bf16.gmra.mxu0 %v1641
      %v1652 = vpop.f32.mrf.mxu0
      %v1653 = vadd.f32 0.0, %v1652
      %v1654 = vpop.f32.mrf.mxu0
      %v1655 = vadd.f32 0.0, %v1654
      %1656 = vdwg.mxu0
      %v1659 = vunpack.c.l.b16 %v1603
      %v1660 = vunpack.c.l.b16 %v1604
      %v1661 = vpack.c.b16 %v1660, %v1659
      %1662 = vrot.lane.b32.xlu0 %v437, 40
      %v1663 = vpop.permute.xlu0 %1662
      %v1666 = vsel %vm495, %v1661, 0
      %1668 = vmatpush.bf16.msra.mxu0 0
      %1669 = vmatpush.bf16.msra.mxu0 0
      %1670 = vmatpush.bf16.msra.mxu0 0
      %1671 = vmatpush.bf16.msra.mxu0 0
      %1672 = vmatpush.bf16.msra.mxu0 0
      %1673 = vmatpush.bf16.msra.mxu0 0
      %1674 = vmatpush.bf16.msra.mxu0 0
      %1675 = vmatpush.bf16.msra.mxu0 %v1663
      %1676 = vmatmul.bf16.gmra.mxu0 %v1666
      %v1677 = vpop.f32.mrf.mxu0
      %v1678 = vadd.f32 0.0, %v1677
      %v1679 = vpop.f32.mrf.mxu0
      %v1680 = vadd.f32 0.0, %v1679
      %1681 = vdwg.mxu0
      %v1684 = vunpack.c.l.b16 %v1605
      %v1685 = vunpack.c.l.b16 %v1606
      %v1686 = vpack.c.b16 %v1685, %v1684
      %1687 = vrot.lane.b32.xlu0 %v464, 40
      %v1688 = vpop.permute.xlu0 %1687
      %v1691 = vsel %vm495, %v1686, 0
      %1693 = vmatpush.bf16.msra.mxu0 0
      %1694 = vmatpush.bf16.msra.mxu0 0
      %1695 = vmatpush.bf16.msra.mxu0 0
      %1696 = vmatpush.bf16.msra.mxu0 0
      %1697 = vmatpush.bf16.msra.mxu0 0
      %1698 = vmatpush.bf16.msra.mxu0 0
      %1699 = vmatpush.bf16.msra.mxu0 0
      %1700 = vmatpush.bf16.msra.mxu0 %v1688
      %1701 = vmatmul.bf16.gmra.mxu0 %v1691
      %v1702 = vpop.f32.mrf.mxu0
      %v1703 = vadd.f32 0.0, %v1702
      %v1704 = vpop.f32.mrf.mxu0
      %v1705 = vadd.f32 0.0, %v1704
      %1706 = vdwg.mxu0
      %v1707 = vpack.c.bf16 %v1628, %v1628
      %v1708 = vpack.c.bf16 %v1630, %v1630
      %v1709 = vpack.c.bf16 %v1653, %v1653
      %v1710 = vpack.c.bf16 %v1655, %v1655
      %v1711 = vpack.c.bf16 %v1678, %v1678
      %v1712 = vpack.c.bf16 %v1680, %v1680
      %v1713 = vpack.c.bf16 %v1703, %v1703
      %v1714 = vpack.c.bf16 %v1705, %v1705
      %1723 = vrot.lane.b32.xlu0 %v1707, 24
      %v1724 = vpop.permute.xlu0 %1723
      %1725 = vrot.lane.b32.xlu0 %v1708, 24
      %v1726 = vpop.permute.xlu0 %1725
      %1727 = vrot.lane.b32.xlu0 %v1709, 24
      %v1728 = vpop.permute.xlu0 %1727
      %1729 = vrot.lane.b32.xlu0 %v1710, 24
      %v1730 = vpop.permute.xlu0 %1729
      %1731 = vrot.lane.b32.xlu0 %v1711, 24
      %v1732 = vpop.permute.xlu0 %1731
      %1733 = vrot.lane.b32.xlu0 %v1712, 24
      %v1734 = vpop.permute.xlu0 %1733
      %1735 = vrot.lane.b32.xlu0 %v1713, 24
      %v1736 = vpop.permute.xlu0 %1735
      %1737 = vrot.lane.b32.xlu0 %v1714, 24
      %v1738 = vpop.permute.xlu0 %1737
      %vm1747 = vcmask 257216
      %1748 = vst.msk [vmem:[#allocation2] sm:$0xf] %vm1747, %v1724
      %1749 = vst.msk [vmem:[#allocation2 + $0x4] sm:$0xf] %vm1747, %v1726
      %1750 = vst.msk [vmem:[#allocation2 + $0x8] sm:$0xf] %vm1747, %v1728
      %1751 = vst.msk [vmem:[#allocation2 + $0xc] sm:$0xf] %vm1747, %v1730
      %1752 = vst.msk [vmem:[#allocation2 + $0x10] sm:$0xf] %vm1747, %v1732
      %1753 = vst.msk [vmem:[#allocation2 + $0x14] sm:$0xf] %vm1747, %v1734
      %1754 = vst.msk [vmem:[#allocation2 + $0x18] sm:$0xf] %vm1747, %v1736
      %1755 = vst.msk [vmem:[#allocation2 + $0x1c] sm:$0xf] %vm1747, %v1738
      %v1756 = vld [vmem:[#allocation2] sm:$0xf]
      %v1757 = vld [vmem:[#allocation2 + $0x4] sm:$0xf]
      %v1758 = vld [vmem:[#allocation2 + $0x8] sm:$0xf]
      %v1759 = vld [vmem:[#allocation2 + $0xc] sm:$0xf]
      %v1760 = vld [vmem:[#allocation2 + $0x10] sm:$0xf]
      %v1761 = vld [vmem:[#allocation2 + $0x14] sm:$0xf]
      %v1762 = vld [vmem:[#allocation2 + $0x18] sm:$0xf]
      %v1763 = vld [vmem:[#allocation2 + $0x1c] sm:$0xf]
      %v1764 = vld [vmem:[%s5] sm:$0xf]
      %v1765 = vld [vmem:[%s5 + $0x4] sm:$0xf]
      %v1766 = vld [vmem:[%s5 + $0x8] sm:$0xf]
      %v1767 = vld [vmem:[%s5 + $0xc] sm:$0xf]
      %v1768 = vld [vmem:[%s6] sm:$0x1]
      %v1770 = vperm.slane %v1768, 0
      %v1780 = vunpack.c.l.b16 %v1756
      %v1781 = vunpack.c.l.b16 %v1757
      %v1782 = vunpack.c.l.b16 %v1758
      %v1783 = vunpack.c.l.b16 %v1759
      %v1784 = vunpack.c.l.b16 %v1760
      %v1785 = vunpack.c.l.b16 %v1761
      %v1786 = vunpack.c.l.b16 %v1762
      %v1787 = vunpack.c.l.b16 %v1763
      %v1788 = vpack.c.b16 %v1781, %v1780
      %v1789 = vpack.c.b16 %v1783, %v1782
      %v1790 = vpack.c.b16 %v1785, %v1784
      %v1791 = vpack.c.b16 %v1787, %v1786
      %v1796 = vunpack.c.l.b16 %v1764
      %v1797 = vunpack.c.l.b16 %v1765
      %v1798 = vunpack.c.l.b16 %v1766
      %v1799 = vunpack.c.l.b16 %v1767
      %v1800 = vpack.c.b16 %v1797, %v1796
      %v1801 = vpack.c.b16 %v1799, %v1798
      %v1805 = vsel %vm312, %v1788, 0
      %v1808 = vsel %vm312, %v1789, 0
      %v1811 = vsel %vm312, %v1790, 0
      %v1814 = vsel %vm312, %v1791, 0
      %1816 = vmatpush.bf16.msra.mxu0 0
      %1817 = vmatpush.bf16.msra.mxu0 0
      %1818 = vmatpush.bf16.msra.mxu0 0
      %1819 = vmatpush.bf16.msra.mxu0 0
      %1820 = vmatpush.bf16.msra.mxu0 0
      %1821 = vmatpush.bf16.msra.mxu0 0
      %1822 = vmatpush.bf16.msra.mxu0 %v1801
      %1823 = vmatpush.bf16.msra.mxu0 %v1800
      %1824 = vmatmul.bf16.gmra.mxu0 %v1805
      %v1825 = vpop.f32.mrf.mxu0
      %v1826 = vadd.f32 %v1770, %v1825
      %v1827 = vpop.f32.mrf.mxu0
      %v1828 = vadd.f32 %v1770, %v1827
      %1829 = vmatmul.bf16.gmra.mxu0 %v1808
      %v1830 = vpop.f32.mrf.mxu0
      %v1831 = vadd.f32 %v1770, %v1830
      %v1832 = vpop.f32.mrf.mxu0
      %v1833 = vadd.f32 %v1770, %v1832
      %1834 = vmatmul.bf16.gmra.mxu0 %v1811
      %v1835 = vpop.f32.mrf.mxu0
      %v1836 = vadd.f32 %v1770, %v1835
      %v1837 = vpop.f32.mrf.mxu0
      %v1838 = vadd.f32 %v1770, %v1837
      %1839 = vmatmul.bf16.gmra.mxu0 %v1814
      %v1840 = vpop.f32.mrf.mxu0
      %v1841 = vadd.f32 %v1770, %v1840
      %v1842 = vpop.f32.mrf.mxu0
      %v1843 = vadd.f32 %v1770, %v1842
      %1844 = vdwg.mxu0
      %1845 = vst.msk [vmem:[%s278] sm:$0xff] %vm312, %v1826
      %1846 = vst.msk [vmem:[%s278 + $0x8] sm:$0xff] %vm312, %v1828
      %1847 = vst.msk [vmem:[%s278 + $0x10] sm:$0xff] %vm312, %v1831
      %1848 = vst.msk [vmem:[%s278 + $0x18] sm:$0xff] %vm312, %v1833
      %1849 = vst.msk [vmem:[%s278 + $0x20] sm:$0xff] %vm312, %v1836
      %1850 = vst.msk [vmem:[%s278 + $0x28] sm:$0xff] %vm312, %v1838
      %1851 = vst.msk [vmem:[%s278 + $0x30] sm:$0xff] %vm312, %v1841
      %1852 = vst.msk [vmem:[%s278 + $0x38] sm:$0xff] %vm312, %v1843
      %p1853 = scmp.lt.s32.totalorder %s18, 1
      %s1854 = scalar_select %p1853, %s18, 1
      %s1855 = smul.addr %s1854, 8
      %s1856 = smul.addr %s1855, 8
      %s1857 = scalar_lea.vmem %s7, %s1856
      // Predicated region
      $region49: #{tpu_custom_call.1} parent=47 // pred_check
        %p1858 = pneg %p188
      $region50: #{tpu_custom_call.1} parent=47 // pred_check_branch
        %1860 = sbr.rel (%p1858) target = $region52
      $region51: #{tpu_custom_call.1} parent=47 // pred_region
        _
      $region52: #{tpu_custom_call.1} parent=47 // pred_fallthru
        _
    $region48: #{tpu_custom_call.1} parent=5 // pred_fallthru
      _
    %p1861 = scmp.le.s32.totalorder 2, %s13
    // Predicated region
    $region53: #{tpu_custom_call.1} parent=5 // pred_check
      %p1862 = pneg %p1861
    $region54: #{tpu_custom_call.1} parent=5 // pred_check_branch
      %1864 = sbr.rel (%p1862) target = $region56
    $region55: #{tpu_custom_call.1} parent=5 // pred_region
      %s1865 = ssub.s32 %s13, 2
      // Predicated region
      $region57: #{tpu_custom_call.1} parent=55 // pred_check
        %p1866 = pneg %p194
      $region58: #{tpu_custom_call.1} parent=55 // pred_check_branch
        %1868 = sbr.rel (%p1866) target = $region60
      $region59: #{tpu_custom_call.1} parent=55 // pred_region
        %p1869 = scmp.lt.s32.totalorder %s19, 1
        %s1870 = scalar_select %p1869, %s19, 1
        %s1871 = smul.addr %s1870, 8
        %s1872 = smul.addr %s1871, 8
        %s1873 = scalar_lea.vmem %s7, %s1872
      $region60: #{tpu_custom_call.1} parent=55 // pred_fallthru
        _
    $region56: #{tpu_custom_call.1} parent=5 // pred_fallthru
      _
  $region6: #{tpu_custom_call.1} parent=0 // loop_footer
    %s17 = sadd.s32 1, %s13
  $region7: #{tpu_custom_call.1} parent=0 // loop_footer_branch
    %12 = sbr.rel target = $region3
  $region8: #{tpu_custom_call.1} parent=0 // loop_exit
    _

</llo_original>
